<compile_context>
chip_gen: v6e
topology: v6e:2x2x1
jax: 0.10.0
libtpu: 0.0.40
codegen_flags: <defaults>
</compile_context>

<pallas_src>
import functools

import jax
import jax.numpy as jnp
from jax.experimental import pallas as pl
from jax.experimental.pallas import tpu as pltpu


def _multi_embedding_kernel(idx_ref, w_ref, o_ref, *, n_levels, n_tokens):
    # idx_ref: (tile_n, n_levels) int32; padded entries are -1
    # w_ref:   (n_levels * n_tokens, token_dim) flattened weight
    #          (row l*n_tokens + k  ==  weight[l, k, :]), VMEM resident
    # o_ref:   (tile_n, token_dim)
    tile_n = idx_ref.shape[0]
    idx = idx_ref[...]                                                # (tile_n, L)

    # Per-level one-hot slices: each compare spans only the K lanes of that
    # level, so -1 padding and out-of-range ids (>= n_tokens) contribute zero,
    # exactly like F.one_hot + F.pad in the reference.  Built in f32 on the
    # VPU (v5e has no bf16 VALU), then one cast to the weight dtype for the
    # MXU feed (one-hot 0/1 values are exact in bf16).
    col = jax.lax.broadcasted_iota(jnp.int32, (tile_n, n_tokens), 1)  # (tile_n, K)
    slabs = [(col == idx[:, l:l + 1]).astype(jnp.float32)
             for l in range(n_levels)]                                # L x (tile_n, K)
    onehot = jnp.concatenate(slabs, axis=1)                           # (tile_n, L*K)

    # Single fused MXU matmul over the full L*K contraction, f32 accumulation,
    # result written straight to the output tile.
    o_ref[...] = jnp.dot(onehot.astype(w_ref.dtype), w_ref[...],
                         preferred_element_type=jnp.float32).astype(o_ref.dtype)


def _vmem_capacity_bytes():
    try:
        return int(pltpu.get_tpu_info().vmem_capacity_bytes)
    except Exception:
        return 64 * 1024 * 1024      # conservative: v7x per-TC VMEM


def _choose_tile_n(n_total, *, per_row_bytes, weight_bytes, vmem_cap):
    # Largest lane/MXU-friendly tile that fits the VMEM budget.  Single-TC
    # parts (v5e/v6e) want one big tile; on v7x large N yields >= 2 grid
    # steps anyway, so the "parallel" axis still shards across both cores.
    budget = min(vmem_cap - (8 << 20), 100 << 20)   # leave compiler-scratch headroom
    avail = max(budget - weight_bytes, 1 << 20)
    max_tile = max(128, min(512, (int(avail // per_row_bytes) // 128) * 128))
    tile = ((n_total + 127) // 128) * 128           # round N up to a multiple of 128
    return min(tile, max_tile)


def _multi_embedding_pallas(idx, w_flat, *, tile_n, vmem_limit):
    # idx: (N_pad, L) int32, w_flat: (L*K, D)
    n_pad, n_levels = idx.shape
    lk, token_dim = w_flat.shape
    n_tokens = lk // n_levels
    assert n_pad % tile_n == 0

    kernel = functools.partial(_multi_embedding_kernel,
                               n_levels=n_levels, n_tokens=n_tokens)

    def build(w_spec):
        return pl.pallas_call(
            kernel,
            out_shape=jax.ShapeDtypeStruct((n_pad, token_dim), w_flat.dtype),
            grid_spec=pltpu.PrefetchScalarGridSpec(
                num_scalar_prefetch=0,
                grid=(n_pad // tile_n,),
                in_specs=[
                    pl.BlockSpec((tile_n, n_levels), lambda i: (i, 0)),
                    w_spec,
                ],
                out_specs=pl.BlockSpec((tile_n, token_dim), lambda i: (i, 0)),
            ),
            compiler_params=pltpu.CompilerParams(
                dimension_semantics=("parallel",),
                vmem_limit_bytes=vmem_limit),
        )

    # Constant index_map => weight stays VMEM-resident; single buffer avoids
    # paying for a second copy of a block that never changes.
    try:
        w_spec = pl.BlockSpec((lk, token_dim), lambda i: (0, 0),
                              pipeline_mode=pl.Buffered(1))
        return build(w_spec)(idx, w_flat)
    except Exception:
        # Fallback (older jax / lowering without single-buffer support).
        w_spec = pl.BlockSpec((lk, token_dim), lambda i: (0, 0))
        return build(w_spec)(idx, w_flat)


def multi_embedding_forward(x_list, weight, *, monolithic=False,
                            quant_level=None):
    """JAX/Pallas equivalent of MultiEmbedding.forward."""
    if len(x_list) == 0:
        return []
    if monolithic:
        w = weight[:1] if (quant_level is None or quant_level == 0) \
            else weight[1:]
    else:
        w = weight
    n_levels, n_tokens, token_dim = w.shape
    lk = n_levels * n_tokens
    w_flat = w.reshape(lk, token_dim)
    itemsize = jnp.dtype(w_flat.dtype).itemsize

    # Pack indices: pad each sequence's level dim to n_levels with -1
    # (-1 -> all-zero one-hot slice -> no contribution, like F.pad zero rows).
    rows, lens = [], []
    for xi in x_list:
        t, li = xi.shape
        xi32 = xi.astype(jnp.int32)
        if li < n_levels:
            xi32 = jnp.concatenate(
                [xi32, jnp.full((t, n_levels - li), -1, jnp.int32)], axis=1)
        rows.append(xi32)
        lens.append(t)
    idx = jnp.concatenate(rows, axis=0)  # (N, L)
    n_total = idx.shape[0]

    # True per-grid-step VMEM footprint (no double hedge):
    weight_bytes = lk * token_dim * itemsize          # single-buffered resident table
    per_row_bytes = (lk * 4                           # f32 one-hot slab
                     + lk * itemsize                  # cast one-hot fed to MXU
                     + 2 * token_dim * itemsize       # out tile (double-buffered)
                     + token_dim * 4                  # f32 matmul result before cast
                     + 2 * 128 * 4)                   # idx tile, lane-padded, double-buffered
    vmem_cap = _vmem_capacity_bytes()

    tile_n = _choose_tile_n(n_total, per_row_bytes=per_row_bytes,
                            weight_bytes=weight_bytes, vmem_cap=vmem_cap)
    n_pad = ((n_total + tile_n - 1) // tile_n) * tile_n
    idx = jnp.pad(idx, ((0, n_pad - n_total), (0, 0)), constant_values=-1)

    vmem_limit = int(min(
        max(weight_bytes + tile_n * per_row_bytes + (2 << 20), 16 << 20),
        min(vmem_cap - (4 << 20), 100 << 20)))

    # TODO(synk): for large vocabularies (table >~ 20-30 MB, esp. on v7x's
    #   64 MiB VMEM) switch to a scalar-prefetch gather path (idx in SMEM,
    #   per-token row DMAs into a double-buffered VMEM slab, VPU sum of L
    #   rows), and/or add a K-tiled "arbitrary" grid axis with an f32 VMEM
    #   accumulator, instead of keeping the whole table resident.
    # TODO(synk): optionally pass idx transposed (L, N_pad) lane-dense and
    #   transpose the tiny tile in-kernel on the XLU to reclaim idx lane
    #   padding on v7x.
    out = _multi_embedding_pallas(idx, w_flat, tile_n=tile_n,
                                  vmem_limit=vmem_limit)  # (N_pad, D)
    out = out[:n_total]

    # split back into per-input chunks
    result, off = [], 0
    for t in lens:
        result.append(out[off:off + t])
        off += t
    return result


def _reference_forward(x_list, weight):
    # pure-JAX reference mirroring the PyTorch einsum path
    w = weight
    n_levels, n_tokens, _ = w.shape
    padded = []
    for xi in x_list:
        oh = jax.nn.one_hot(xi.astype(jnp.int32), n_tokens, dtype=w.dtype)
        oh = jnp.pad(oh, ((0, 0), (0, n_levels - xi.shape[1]), (0, 0)))
        padded.append(oh)
    x = jnp.concatenate(padded, axis=0)          # (N, L, K)
    out = jnp.einsum('lkd,nlk->nd', w, x)
    result, off = [], 0
    for xi in x_list:
        result.append(out[off:off + xi.shape[0]])
        off += xi.shape[0]
    return result


if __name__ == "__main__":
    key = jax.random.PRNGKey(0)
    max_n_levels, n_tokens, token_dim = 4, 128, 128

    k_w, k_x1, k_x2 = jax.random.split(key, 3)
    # deterministic synthetic weights (module's torch.randn equivalent)
    weight = jax.random.normal(k_w, (max_n_levels, n_tokens, token_dim),
                               dtype=jnp.float32)

    # two variable-length sequences with different numbers of quant levels
    # (total 69 rows -> one 128-row tile, row & level padding both exercised)
    x1 = jax.random.randint(k_x1, (40, 2), 0, n_tokens, dtype=jnp.int32)
    x2 = jax.random.randint(k_x2, (29, 3), 0, n_tokens, dtype=jnp.int32)
    x_list = [x1, x2]

    # f32 weights path
    out_list = multi_embedding_forward(x_list, weight)
    out_list = [jax.block_until_ready(o) for o in out_list]
    ref_list = _reference_forward(x_list, weight)
    for o, r, xi in zip(out_list, ref_list, x_list):
        assert o.shape == (xi.shape[0], token_dim)
        assert jnp.allclose(o, r, atol=1e-4, rtol=1e-4)

    # bf16 weights path (fast bf16 MXU feed with f32 accumulation;
    # one-hot values 0/1 are exact in bf16, only the weights are rounded).
    w_bf16 = weight.astype(jnp.bfloat16)
    out_bf = multi_embedding_forward(x_list, w_bf16)
    out_bf = [jax.block_until_ready(o) for o in out_bf]
    ref_bf = _reference_forward(x_list, w_bf16.astype(jnp.float32))
    for o, r, xi in zip(out_bf, ref_bf, x_list):
        assert o.shape == (xi.shape[0], token_dim)
        assert o.dtype == jnp.bfloat16
        assert jnp.allclose(o.astype(jnp.float32), r, atol=5e-2, rtol=2e-2)

    print("KERNEL_OK")
</pallas_src>

<mosaic_0001>
module attributes {stable_mosaic.version = 11 : i64} {
  func.func @_multi_embedding_kernel(%arg0: i32, %arg1: memref<128x4xi32, #tpu.memory_space<vmem>>, %arg2: memref<512x128xf32, #tpu.memory_space<vmem>>, %arg3: memref<128x128xf32, #tpu.memory_space<vmem>>) attributes {dimension_semantics = [#tpu.dimension_semantics<parallel>], iteration_bounds = array<i64: 1>, scalar_prefetch = 0 : i64, scratch_operands = 0 : i64, tpu.core_type = #tpu.core_type<tc>, window_params = [{transform_indices = @transform_0, window_bounds = array<i64: 128, 4>}, {pipeline_mode = #tpu.pipeline_mode<synchronous>, transform_indices = @transform_1, window_bounds = array<i64: 512, 128>}, {transform_indices = @transform_2, window_bounds = array<i64: 128, 128>}]} {
    %c0 = arith.constant 0 : index
    %c0_0 = arith.constant 0 : index
    %0 = vector.load %arg1[%c0, %c0_0] : memref<128x4xi32, #tpu.memory_space<vmem>>, vector<128x4xi32>
    %1 = tpu.iota {dimensions = array<i32: 1>} : vector<128x128xi32>
    %2 = vector.extract_strided_slice %0 {offsets = [0, 0], sizes = [128, 1], strides = [1, 1]} : vector<128x4xi32> to vector<128x1xi32>
    %3 = vector.broadcast %2 : vector<128x1xi32> to vector<128x128xi32>
    %4 = arith.cmpi eq, %1, %3 : vector<128x128xi32>
    %5 = arith.extui %4 : vector<128x128xi1> to vector<128x128xi32>
    %6 = arith.sitofp %5 : vector<128x128xi32> to vector<128x128xf32>
    %7 = vector.extract_strided_slice %0 {offsets = [0, 1], sizes = [128, 1], strides = [1, 1]} : vector<128x4xi32> to vector<128x1xi32>
    %8 = vector.broadcast %7 : vector<128x1xi32> to vector<128x128xi32>
    %9 = arith.cmpi eq, %1, %8 : vector<128x128xi32>
    %10 = arith.extui %9 : vector<128x128xi1> to vector<128x128xi32>
    %11 = arith.sitofp %10 : vector<128x128xi32> to vector<128x128xf32>
    %12 = vector.extract_strided_slice %0 {offsets = [0, 2], sizes = [128, 1], strides = [1, 1]} : vector<128x4xi32> to vector<128x1xi32>
    %13 = vector.broadcast %12 : vector<128x1xi32> to vector<128x128xi32>
    %14 = arith.cmpi eq, %1, %13 : vector<128x128xi32>
    %15 = arith.extui %14 : vector<128x128xi1> to vector<128x128xi32>
    %16 = arith.sitofp %15 : vector<128x128xi32> to vector<128x128xf32>
    %17 = vector.extract_strided_slice %0 {offsets = [0, 3], sizes = [128, 1], strides = [1, 1]} : vector<128x4xi32> to vector<128x1xi32>
    %18 = vector.broadcast %17 : vector<128x1xi32> to vector<128x128xi32>
    %19 = arith.cmpi eq, %1, %18 : vector<128x128xi32>
    %20 = arith.extui %19 : vector<128x128xi1> to vector<128x128xi32>
    %21 = arith.sitofp %20 : vector<128x128xi32> to vector<128x128xf32>
    %22 = tpu.concatenate %6, %11, %16, %21 in 1 : vector<128x128xf32>, vector<128x128xf32>, vector<128x128xf32>, vector<128x128xf32> -> vector<128x512xf32>
    %c0_1 = arith.constant 0 : index
    %c0_2 = arith.constant 0 : index
    %23 = vector.load %arg2[%c0_1, %c0_2] : memref<512x128xf32, #tpu.memory_space<vmem>>, vector<512x128xf32>
    %cst = arith.constant dense<0.000000e+00> : vector<128x128xf32>
    %24 = tpu.matmul %22, %23, %cst {dimension_numbers = #tpu.dot_dimension_numbers<[1], [0], [0], [1], [0, 0, 1, 1], [], []>} : vector<128x512xf32>, vector<512x128xf32>, vector<128x128xf32> -> vector<128x128xf32>
    %c0_3 = arith.constant 0 : index
    %c0_4 = arith.constant 0 : index
    %25 = vector.load %arg3[%c0_3, %c0_4] : memref<128x128xf32, #tpu.memory_space<vmem>>, vector<128x128xf32>
    tpu.vector_store %arg3[%c0_3, %c0_4], %24 {strides = array<i32>} : memref<128x128xf32, #tpu.memory_space<vmem>>, vector<128x128xf32>,
    return
  }
  func.func @transform_0(%arg0: i32) -> (i32, i32) {
    %c0_i32 = arith.constant 0 : i32
    %c0_i32_0 = arith.constant 0 : i32
    return %arg0, %c0_i32 : i32, i32
  }
  func.func @transform_1(%arg0: i32) -> (i32, i32) {
    %c0_i32 = arith.constant 0 : i32
    %c0_i32_0 = arith.constant 0 : i32
    %c0_i32_1 = arith.constant 0 : i32
    return %c0_i32, %c0_i32_0 : i32, i32
  }
  func.func @transform_2(%arg0: i32) -> (i32, i32) {
    %c0_i32 = arith.constant 0 : i32
    %c0_i32_0 = arith.constant 0 : i32
    return %arg0, %c0_i32 : i32, i32
  }
}

module attributes {stable_mosaic.version = 11 : i64} {
  func.func @_multi_embedding_kernel(%arg0: i32, %arg1: memref<128x4xi32, #tpu.memory_space<vmem>>, %arg2: memref<512x128xf32, #tpu.memory_space<vmem>>, %arg3: memref<128x128xf32, #tpu.memory_space<vmem>>) attributes {dimension_semantics = [#tpu.dimension_semantics<parallel>], iteration_bounds = array<i64: 1>, scalar_prefetch = 0 : i64, scratch_operands = 0 : i64, tpu.core_type = #tpu.core_type<tc>, window_params = [{transform_indices = @transform_0, window_bounds = array<i64: 128, 4>}, {pipeline_mode = #tpu.pipeline_mode<synchronous>, transform_indices = @transform_1, window_bounds = array<i64: 512, 128>}, {transform_indices = @transform_2, window_bounds = array<i64: 128, 128>}]} {
    %c0 = arith.constant 0 : index
    %c0_0 = arith.constant 0 : index
    %0 = vector.load %arg1[%c0, %c0_0] : memref<128x4xi32, #tpu.memory_space<vmem>>, vector<128x4xi32>
    %1 = tpu.iota {dimensions = array<i32: 1>} : vector<128x128xi32>
    %2 = vector.extract_strided_slice %0 {offsets = [0, 0], sizes = [128, 1], strides = [1, 1]} : vector<128x4xi32> to vector<128x1xi32>
    %3 = vector.broadcast %2 : vector<128x1xi32> to vector<128x128xi32>
    %4 = arith.cmpi eq, %1, %3 : vector<128x128xi32>
    %5 = arith.extui %4 : vector<128x128xi1> to vector<128x128xi32>
    %6 = arith.sitofp %5 : vector<128x128xi32> to vector<128x128xf32>
    %7 = vector.extract_strided_slice %0 {offsets = [0, 1], sizes = [128, 1], strides = [1, 1]} : vector<128x4xi32> to vector<128x1xi32>
    %8 = vector.broadcast %7 : vector<128x1xi32> to vector<128x128xi32>
    %9 = arith.cmpi eq, %1, %8 : vector<128x128xi32>
    %10 = arith.extui %9 : vector<128x128xi1> to vector<128x128xi32>
    %11 = arith.sitofp %10 : vector<128x128xi32> to vector<128x128xf32>
    %12 = vector.extract_strided_slice %0 {offsets = [0, 2], sizes = [128, 1], strides = [1, 1]} : vector<128x4xi32> to vector<128x1xi32>
    %13 = vector.broadcast %12 : vector<128x1xi32> to vector<128x128xi32>
    %14 = arith.cmpi eq, %1, %13 : vector<128x128xi32>
    %15 = arith.extui %14 : vector<128x128xi1> to vector<128x128xi32>
    %16 = arith.sitofp %15 : vector<128x128xi32> to vector<128x128xf32>
    %17 = vector.extract_strided_slice %0 {offsets = [0, 3], sizes = [128, 1], strides = [1, 1]} : vector<128x4xi32> to vector<128x1xi32>
    %18 = vector.broadcast %17 : vector<128x1xi32> to vector<128x128xi32>
    %19 = arith.cmpi eq, %1, %18 : vector<128x128xi32>
    %20 = arith.extui %19 : vector<128x128xi1> to vector<128x128xi32>
    %21 = arith.sitofp %20 : vector<128x128xi32> to vector<128x128xf32>
    %22 = tpu.concatenate %6, %11, %16, %21 in 1 : vector<128x128xf32>, vector<128x128xf32>, vector<128x128xf32>, vector<128x128xf32> -> vector<128x512xf32>
    %c0_1 = arith.constant 0 : index
    %c0_2 = arith.constant 0 : index
    %23 = vector.load %arg2[%c0_1, %c0_2] : memref<512x128xf32, #tpu.memory_space<vmem>>, vector<512x128xf32>
    %cst = arith.constant dense<0.000000e+00> : vector<128x128xf32>
    %24 = tpu.matmul %22, %23, %cst {dimension_numbers = #tpu.dot_dimension_numbers<[1], [0], [0], [1], [0, 0, 1, 1], [], []>} : vector<128x512xf32>, vector<512x128xf32>, vector<128x128xf32> -> vector<128x128xf32>
    %c0_3 = arith.constant 0 : index
    %c0_4 = arith.constant 0 : index
    %25 = vector.load %arg3[%c0_3, %c0_4] : memref<128x128xf32, #tpu.memory_space<vmem>>, vector<128x128xf32>
    tpu.vector_store %arg3[%c0_3, %c0_4], %24 {strides = array<i32>} : memref<128x128xf32, #tpu.memory_space<vmem>>, vector<128x128xf32>,
    return
  }
  func.func @transform_0(%arg0: i32) -> (i32, i32) {
    %c0_i32 = arith.constant 0 : i32
    %c0_i32_0 = arith.constant 0 : i32
    return %arg0, %c0_i32 : i32, i32
  }
  func.func @transform_1(%arg0: i32) -> (i32, i32) {
    %c0_i32 = arith.constant 0 : i32
    %c0_i32_0 = arith.constant 0 : i32
    %c0_i32_1 = arith.constant 0 : i32
    return %c0_i32, %c0_i32_0 : i32, i32
  }
  func.func @transform_2(%arg0: i32) -> (i32, i32) {
    %c0_i32 = arith.constant 0 : i32
    %c0_i32_0 = arith.constant 0 : i32
    return %arg0, %c0_i32 : i32, i32
  }
}

</mosaic_0001>

<llo_original>
// kernel: tpu_custom_call.1
$region0: #{tpu_custom_call.1}
  #allocation0 [shape = 'u32[]', space=smem, size = 0x4, offset = 0x4, fixed_abs, tag = 'smem constant byte address 0x4 - core index']
  #allocation1 [shape = 'u32[144,128]{1,0:T(1,128)}', space=vmem, size = 0x12000, scoped, tag = 'internal scratch']
  %s0 = inlined_call_operand.vmem [shape: s32[128,4], index: 0, kind: input, shape index: {}]
  %s1 = inlined_call_operand.hbm [shape: f32[512,128], index: 1, kind: input, shape index: {}]
  %s2 = inlined_call_operand.hbm [shape: f32[128,128], index: 2, kind: output, shape index: {}]
  %s3 = sld [smem:[#allocation0]]
  $region22: #{tpu_custom_call.1} parent=0
    _
  %s5 = ssub.s32 1, %s3
  %s6 = scalar_select 0, %s5, %s3
  $region1: #{tpu_custom_call.1} parent=0
    #allocation2 [shape = 'u8[262144]{0}', space=vmem, size = 0x40000, scoped, tag = 'input window, operand 1, single buffered']
    #allocation3 [shape = 's32[1]{0}', space=sflag, size = 0x4, scoped, tag = 'scoped memory for tpu_custom_call.1']
    #allocation4 [shape = 's32[1]{0}', space=sflag, size = 0x4, scoped, tag = 'scoped memory for tpu_custom_call.1']
    #allocation5 [shape = 'u8[65536]{0}', space=vmem, size = 0x10000, scoped, tag = 'output window, operand 0, single buffered']
    %7 = vsyncpa [#allocation3], 0
    %8 = vsyncpa [#allocation4], 0
    // Predicated region
    $region2: #{tpu_custom_call.1} parent=1 // pred_check
      _
    $region3: #{tpu_custom_call.1} parent=1 // pred_check_branch
      %10 = sbr.rel (0) target = $region5
    $region4: #{tpu_custom_call.1} parent=1 // pred_region
      _
    $region5: #{tpu_custom_call.1} parent=1 // pred_fallthru
      _
    // Predicated region
    $region6: #{tpu_custom_call.1} parent=1 // pred_check
      _
    $region7: #{tpu_custom_call.1} parent=1 // pred_check_branch
      %12 = sbr.rel (0) target = $region9
    $region8: #{tpu_custom_call.1} parent=1 // pred_region
      %s14 = ssub.s32 8192, 8192
      %15 = vsyncadd [#allocation3], %s14
      %s16 = sshll.u32 [#allocation2], 4
      %s17 = int_to_ptr.vmem [resolvable:$true] %s16
      %22 = dma.hbm_to_vmem [thread:$0]  %s1, 8192, %s17, [#allocation3], 128, 128, 8
    $region9: #{tpu_custom_call.1} parent=1 // pred_fallthru
      _
    // Predicated region
    $region10: #{tpu_custom_call.1} parent=1 // pred_check
      _
    $region11: #{tpu_custom_call.1} parent=1 // pred_check_branch
      %24 = sbr.rel (0) target = $region13
    $region12: #{tpu_custom_call.1} parent=1 // pred_region
      %25 = dma.done [#allocation3], 8192
    $region13: #{tpu_custom_call.1} parent=1 // pred_fallthru
      _
    %v26 = vld [vmem:[%s0] sm:$0xff]
    %v27 = vld [vmem:[%s0 + $0x8] sm:$0xff]
    %v28 = vld [vmem:[%s0 + $0x10] sm:$0xff]
    %v29 = vld [vmem:[%s0 + $0x18] sm:$0xff]
    %v30 = vld [vmem:[%s0 + $0x20] sm:$0xff]
    %v31 = vld [vmem:[%s0 + $0x28] sm:$0xff]
    %v32 = vld [vmem:[%s0 + $0x30] sm:$0xff]
    %v33 = vld [vmem:[%s0 + $0x38] sm:$0xff]
    %v34 = vld [vmem:[%s0 + $0x40] sm:$0xff]
    %v35 = vld [vmem:[%s0 + $0x48] sm:$0xff]
    %v36 = vld [vmem:[%s0 + $0x50] sm:$0xff]
    %v37 = vld [vmem:[%s0 + $0x58] sm:$0xff]
    %v38 = vld [vmem:[%s0 + $0x60] sm:$0xff]
    %v39 = vld [vmem:[%s0 + $0x68] sm:$0xff]
    %v40 = vld [vmem:[%s0 + $0x70] sm:$0xff]
    %v41 = vld [vmem:[%s0 + $0x78] sm:$0xff]
    %v42 = vlaneseq
    %v43 = vand.u32 %v42, 127
    %44 = vset.pattern.permute.xlu0 0
    %45 = vperm.xlu0 %44, %v26
    %v46 = vpop.permute.xlu0 %45
    %47 = vset.pattern.permute.xlu0 0
    %48 = vperm.xlu0 %47, %v27
    %v49 = vpop.permute.xlu0 %48
    %50 = vset.pattern.permute.xlu0 0
    %51 = vperm.xlu0 %50, %v28
    %v52 = vpop.permute.xlu0 %51
    %53 = vset.pattern.permute.xlu0 0
    %54 = vperm.xlu0 %53, %v29
    %v55 = vpop.permute.xlu0 %54
    %56 = vset.pattern.permute.xlu0 0
    %57 = vperm.xlu0 %56, %v30
    %v58 = vpop.permute.xlu0 %57
    %59 = vset.pattern.permute.xlu0 0
    %60 = vperm.xlu0 %59, %v31
    %v61 = vpop.permute.xlu0 %60
    %62 = vset.pattern.permute.xlu0 0
    %63 = vperm.xlu0 %62, %v32
    %v64 = vpop.permute.xlu0 %63
    %65 = vset.pattern.permute.xlu0 0
    %66 = vperm.xlu0 %65, %v33
    %v67 = vpop.permute.xlu0 %66
    %68 = vset.pattern.permute.xlu0 0
    %69 = vperm.xlu0 %68, %v34
    %v70 = vpop.permute.xlu0 %69
    %71 = vset.pattern.permute.xlu0 0
    %72 = vperm.xlu0 %71, %v35
    %v73 = vpop.permute.xlu0 %72
    %74 = vset.pattern.permute.xlu0 0
    %75 = vperm.xlu0 %74, %v36
    %v76 = vpop.permute.xlu0 %75
    %77 = vset.pattern.permute.xlu0 0
    %78 = vperm.xlu0 %77, %v37
    %v79 = vpop.permute.xlu0 %78
    %80 = vset.pattern.permute.xlu0 0
    %81 = vperm.xlu0 %80, %v38
    %v82 = vpop.permute.xlu0 %81
    %83 = vset.pattern.permute.xlu0 0
    %84 = vperm.xlu0 %83, %v39
    %v85 = vpop.permute.xlu0 %84
    %86 = vset.pattern.permute.xlu0 0
    %87 = vperm.xlu0 %86, %v40
    %v88 = vpop.permute.xlu0 %87
    %89 = vset.pattern.permute.xlu0 0
    %90 = vperm.xlu0 %89, %v41
    %v91 = vpop.permute.xlu0 %90
    %vm92 = vcmp.eq.s32.totalorder %v43, %v46
    %vm93 = vcmp.eq.s32.totalorder %v43, %v49
    %vm94 = vcmp.eq.s32.totalorder %v43, %v52
    %vm95 = vcmp.eq.s32.totalorder %v43, %v55
    %vm96 = vcmp.eq.s32.totalorder %v43, %v58
    %vm97 = vcmp.eq.s32.totalorder %v43, %v61
    %vm98 = vcmp.eq.s32.totalorder %v43, %v64
    %vm99 = vcmp.eq.s32.totalorder %v43, %v67
    %vm100 = vcmp.eq.s32.totalorder %v43, %v70
    %vm101 = vcmp.eq.s32.totalorder %v43, %v73
    %vm102 = vcmp.eq.s32.totalorder %v43, %v76
    %vm103 = vcmp.eq.s32.totalorder %v43, %v79
    %vm104 = vcmp.eq.s32.totalorder %v43, %v82
    %vm105 = vcmp.eq.s32.totalorder %v43, %v85
    %vm106 = vcmp.eq.s32.totalorder %v43, %v88
    %vm107 = vcmp.eq.s32.totalorder %v43, %v91
    %v108 = vsel %vm92, 1, 0
    %v109 = vsel %vm93, 1, 0
    %v110 = vsel %vm94, 1, 0
    %v111 = vsel %vm95, 1, 0
    %v112 = vsel %vm96, 1, 0
    %v113 = vsel %vm97, 1, 0
    %v114 = vsel %vm98, 1, 0
    %v115 = vsel %vm99, 1, 0
    %v116 = vsel %vm100, 1, 0
    %v117 = vsel %vm101, 1, 0
    %v118 = vsel %vm102, 1, 0
    %v119 = vsel %vm103, 1, 0
    %v120 = vsel %vm104, 1, 0
    %v121 = vsel %vm105, 1, 0
    %v122 = vsel %vm106, 1, 0
    %v123 = vsel %vm107, 1, 0
    %v124 = vcvt.s32.f32 %v108
    %v125 = vcvt.s32.f32 %v109
    %v126 = vcvt.s32.f32 %v110
    %v127 = vcvt.s32.f32 %v111
    %v128 = vcvt.s32.f32 %v112
    %v129 = vcvt.s32.f32 %v113
    %v130 = vcvt.s32.f32 %v114
    %v131 = vcvt.s32.f32 %v115
    %v132 = vcvt.s32.f32 %v116
    %v133 = vcvt.s32.f32 %v117
    %v134 = vcvt.s32.f32 %v118
    %v135 = vcvt.s32.f32 %v119
    %v136 = vcvt.s32.f32 %v120
    %v137 = vcvt.s32.f32 %v121
    %v138 = vcvt.s32.f32 %v122
    %v139 = vcvt.s32.f32 %v123
    %140 = vset.pattern.permute.xlu0 1
    %141 = vperm.xlu0 %140, %v26
    %v142 = vpop.permute.xlu0 %141
    %143 = vset.pattern.permute.xlu0 1
    %144 = vperm.xlu0 %143, %v27
    %v145 = vpop.permute.xlu0 %144
    %146 = vset.pattern.permute.xlu0 1
    %147 = vperm.xlu0 %146, %v28
    %v148 = vpop.permute.xlu0 %147
    %149 = vset.pattern.permute.xlu0 1
    %150 = vperm.xlu0 %149, %v29
    %v151 = vpop.permute.xlu0 %150
    %152 = vset.pattern.permute.xlu0 1
    %153 = vperm.xlu0 %152, %v30
    %v154 = vpop.permute.xlu0 %153
    %155 = vset.pattern.permute.xlu0 1
    %156 = vperm.xlu0 %155, %v31
    %v157 = vpop.permute.xlu0 %156
    %158 = vset.pattern.permute.xlu0 1
    %159 = vperm.xlu0 %158, %v32
    %v160 = vpop.permute.xlu0 %159
    %161 = vset.pattern.permute.xlu0 1
    %162 = vperm.xlu0 %161, %v33
    %v163 = vpop.permute.xlu0 %162
    %164 = vset.pattern.permute.xlu0 1
    %165 = vperm.xlu0 %164, %v34
    %v166 = vpop.permute.xlu0 %165
    %167 = vset.pattern.permute.xlu0 1
    %168 = vperm.xlu0 %167, %v35
    %v169 = vpop.permute.xlu0 %168
    %170 = vset.pattern.permute.xlu0 1
    %171 = vperm.xlu0 %170, %v36
    %v172 = vpop.permute.xlu0 %171
    %173 = vset.pattern.permute.xlu0 1
    %174 = vperm.xlu0 %173, %v37
    %v175 = vpop.permute.xlu0 %174
    %176 = vset.pattern.permute.xlu0 1
    %177 = vperm.xlu0 %176, %v38
    %v178 = vpop.permute.xlu0 %177
    %179 = vset.pattern.permute.xlu0 1
    %180 = vperm.xlu0 %179, %v39
    %v181 = vpop.permute.xlu0 %180
    %182 = vset.pattern.permute.xlu0 1
    %183 = vperm.xlu0 %182, %v40
    %v184 = vpop.permute.xlu0 %183
    %185 = vset.pattern.permute.xlu0 1
    %186 = vperm.xlu0 %185, %v41
    %v187 = vpop.permute.xlu0 %186
    %vm188 = vcmp.eq.s32.totalorder %v43, %v142
    %vm189 = vcmp.eq.s32.totalorder %v43, %v145
    %vm190 = vcmp.eq.s32.totalorder %v43, %v148
    %vm191 = vcmp.eq.s32.totalorder %v43, %v151
    %vm192 = vcmp.eq.s32.totalorder %v43, %v154
    %vm193 = vcmp.eq.s32.totalorder %v43, %v157
    %vm194 = vcmp.eq.s32.totalorder %v43, %v160
    %vm195 = vcmp.eq.s32.totalorder %v43, %v163
    %vm196 = vcmp.eq.s32.totalorder %v43, %v166
    %vm197 = vcmp.eq.s32.totalorder %v43, %v169
    %vm198 = vcmp.eq.s32.totalorder %v43, %v172
    %vm199 = vcmp.eq.s32.totalorder %v43, %v175
    %vm200 = vcmp.eq.s32.totalorder %v43, %v178
    %vm201 = vcmp.eq.s32.totalorder %v43, %v181
    %vm202 = vcmp.eq.s32.totalorder %v43, %v184
    %vm203 = vcmp.eq.s32.totalorder %v43, %v187
    %v204 = vsel %vm188, 1, 0
    %v205 = vsel %vm189, 1, 0
    %v206 = vsel %vm190, 1, 0
    %v207 = vsel %vm191, 1, 0
    %v208 = vsel %vm192, 1, 0
    %v209 = vsel %vm193, 1, 0
    %v210 = vsel %vm194, 1, 0
    %v211 = vsel %vm195, 1, 0
    %v212 = vsel %vm196, 1, 0
    %v213 = vsel %vm197, 1, 0
    %v214 = vsel %vm198, 1, 0
    %v215 = vsel %vm199, 1, 0
    %v216 = vsel %vm200, 1, 0
    %v217 = vsel %vm201, 1, 0
    %v218 = vsel %vm202, 1, 0
    %v219 = vsel %vm203, 1, 0
    %v220 = vcvt.s32.f32 %v204
    %v221 = vcvt.s32.f32 %v205
    %v222 = vcvt.s32.f32 %v206
    %v223 = vcvt.s32.f32 %v207
    %v224 = vcvt.s32.f32 %v208
    %v225 = vcvt.s32.f32 %v209
    %v226 = vcvt.s32.f32 %v210
    %v227 = vcvt.s32.f32 %v211
    %v228 = vcvt.s32.f32 %v212
    %v229 = vcvt.s32.f32 %v213
    %v230 = vcvt.s32.f32 %v214
    %v231 = vcvt.s32.f32 %v215
    %v232 = vcvt.s32.f32 %v216
    %v233 = vcvt.s32.f32 %v217
    %v234 = vcvt.s32.f32 %v218
    %v235 = vcvt.s32.f32 %v219
    %236 = vset.pattern.permute.xlu0 2
    %237 = vperm.xlu0 %236, %v26
    %v238 = vpop.permute.xlu0 %237
    %239 = vset.pattern.permute.xlu0 2
    %240 = vperm.xlu0 %239, %v27
    %v241 = vpop.permute.xlu0 %240
    %242 = vset.pattern.permute.xlu0 2
    %243 = vperm.xlu0 %242, %v28
    %v244 = vpop.permute.xlu0 %243
    %245 = vset.pattern.permute.xlu0 2
    %246 = vperm.xlu0 %245, %v29
    %v247 = vpop.permute.xlu0 %246
    %248 = vset.pattern.permute.xlu0 2
    %249 = vperm.xlu0 %248, %v30
    %v250 = vpop.permute.xlu0 %249
    %251 = vset.pattern.permute.xlu0 2
    %252 = vperm.xlu0 %251, %v31
    %v253 = vpop.permute.xlu0 %252
    %254 = vset.pattern.permute.xlu0 2
    %255 = vperm.xlu0 %254, %v32
    %v256 = vpop.permute.xlu0 %255
    %257 = vset.pattern.permute.xlu0 2
    %258 = vperm.xlu0 %257, %v33
    %v259 = vpop.permute.xlu0 %258
    %260 = vset.pattern.permute.xlu0 2
    %261 = vperm.xlu0 %260, %v34
    %v262 = vpop.permute.xlu0 %261
    %263 = vset.pattern.permute.xlu0 2
    %264 = vperm.xlu0 %263, %v35
    %v265 = vpop.permute.xlu0 %264
    %266 = vset.pattern.permute.xlu0 2
    %267 = vperm.xlu0 %266, %v36
    %v268 = vpop.permute.xlu0 %267
    %269 = vset.pattern.permute.xlu0 2
    %270 = vperm.xlu0 %269, %v37
    %v271 = vpop.permute.xlu0 %270
    %272 = vset.pattern.permute.xlu0 2
    %273 = vperm.xlu0 %272, %v38
    %v274 = vpop.permute.xlu0 %273
    %275 = vset.pattern.permute.xlu0 2
    %276 = vperm.xlu0 %275, %v39
    %v277 = vpop.permute.xlu0 %276
    %278 = vset.pattern.permute.xlu0 2
    %279 = vperm.xlu0 %278, %v40
    %v280 = vpop.permute.xlu0 %279
    %281 = vset.pattern.permute.xlu0 2
    %282 = vperm.xlu0 %281, %v41
    %v283 = vpop.permute.xlu0 %282
    %vm284 = vcmp.eq.s32.totalorder %v43, %v238
    %vm285 = vcmp.eq.s32.totalorder %v43, %v241
    %vm286 = vcmp.eq.s32.totalorder %v43, %v244
    %vm287 = vcmp.eq.s32.totalorder %v43, %v247
    %vm288 = vcmp.eq.s32.totalorder %v43, %v250
    %vm289 = vcmp.eq.s32.totalorder %v43, %v253
    %vm290 = vcmp.eq.s32.totalorder %v43, %v256
    %vm291 = vcmp.eq.s32.totalorder %v43, %v259
    %vm292 = vcmp.eq.s32.totalorder %v43, %v262
    %vm293 = vcmp.eq.s32.totalorder %v43, %v265
    %vm294 = vcmp.eq.s32.totalorder %v43, %v268
    %vm295 = vcmp.eq.s32.totalorder %v43, %v271
    %vm296 = vcmp.eq.s32.totalorder %v43, %v274
    %vm297 = vcmp.eq.s32.totalorder %v43, %v277
    %vm298 = vcmp.eq.s32.totalorder %v43, %v280
    %vm299 = vcmp.eq.s32.totalorder %v43, %v283
    %v300 = vsel %vm284, 1, 0
    %v301 = vsel %vm285, 1, 0
    %v302 = vsel %vm286, 1, 0
    %v303 = vsel %vm287, 1, 0
    %v304 = vsel %vm288, 1, 0
    %v305 = vsel %vm289, 1, 0
    %v306 = vsel %vm290, 1, 0
    %v307 = vsel %vm291, 1, 0
    %v308 = vsel %vm292, 1, 0
    %v309 = vsel %vm293, 1, 0
    %v310 = vsel %vm294, 1, 0
    %v311 = vsel %vm295, 1, 0
    %v312 = vsel %vm296, 1, 0
    %v313 = vsel %vm297, 1, 0
    %v314 = vsel %vm298, 1, 0
    %v315 = vsel %vm299, 1, 0
    %v316 = vcvt.s32.f32 %v300
    %v317 = vcvt.s32.f32 %v301
    %v318 = vcvt.s32.f32 %v302
    %v319 = vcvt.s32.f32 %v303
    %v320 = vcvt.s32.f32 %v304
    %v321 = vcvt.s32.f32 %v305
    %v322 = vcvt.s32.f32 %v306
    %v323 = vcvt.s32.f32 %v307
    %v324 = vcvt.s32.f32 %v308
    %v325 = vcvt.s32.f32 %v309
    %v326 = vcvt.s32.f32 %v310
    %v327 = vcvt.s32.f32 %v311
    %v328 = vcvt.s32.f32 %v312
    %v329 = vcvt.s32.f32 %v313
    %v330 = vcvt.s32.f32 %v314
    %v331 = vcvt.s32.f32 %v315
    %332 = vset.pattern.permute.xlu0 3
    %333 = vperm.xlu0 %332, %v26
    %v334 = vpop.permute.xlu0 %333
    %335 = vset.pattern.permute.xlu0 3
    %336 = vperm.xlu0 %335, %v27
    %v337 = vpop.permute.xlu0 %336
    %338 = vset.pattern.permute.xlu0 3
    %339 = vperm.xlu0 %338, %v28
    %v340 = vpop.permute.xlu0 %339
    %341 = vset.pattern.permute.xlu0 3
    %342 = vperm.xlu0 %341, %v29
    %v343 = vpop.permute.xlu0 %342
    %344 = vset.pattern.permute.xlu0 3
    %345 = vperm.xlu0 %344, %v30
    %v346 = vpop.permute.xlu0 %345
    %347 = vset.pattern.permute.xlu0 3
    %348 = vperm.xlu0 %347, %v31
    %v349 = vpop.permute.xlu0 %348
    %350 = vset.pattern.permute.xlu0 3
    %351 = vperm.xlu0 %350, %v32
    %v352 = vpop.permute.xlu0 %351
    %353 = vset.pattern.permute.xlu0 3
    %354 = vperm.xlu0 %353, %v33
    %v355 = vpop.permute.xlu0 %354
    %356 = vset.pattern.permute.xlu0 3
    %357 = vperm.xlu0 %356, %v34
    %v358 = vpop.permute.xlu0 %357
    %359 = vset.pattern.permute.xlu0 3
    %360 = vperm.xlu0 %359, %v35
    %v361 = vpop.permute.xlu0 %360
    %362 = vset.pattern.permute.xlu0 3
    %363 = vperm.xlu0 %362, %v36
    %v364 = vpop.permute.xlu0 %363
    %365 = vset.pattern.permute.xlu0 3
    %366 = vperm.xlu0 %365, %v37
    %v367 = vpop.permute.xlu0 %366
    %368 = vset.pattern.permute.xlu0 3
    %369 = vperm.xlu0 %368, %v38
    %v370 = vpop.permute.xlu0 %369
    %371 = vset.pattern.permute.xlu0 3
    %372 = vperm.xlu0 %371, %v39
    %v373 = vpop.permute.xlu0 %372
    %374 = vset.pattern.permute.xlu0 3
    %375 = vperm.xlu0 %374, %v40
    %v376 = vpop.permute.xlu0 %375
    %377 = vset.pattern.permute.xlu0 3
    %378 = vperm.xlu0 %377, %v41
    %v379 = vpop.permute.xlu0 %378
    %vm380 = vcmp.eq.s32.totalorder %v43, %v334
    %vm381 = vcmp.eq.s32.totalorder %v43, %v337
    %vm382 = vcmp.eq.s32.totalorder %v43, %v340
    %vm383 = vcmp.eq.s32.totalorder %v43, %v343
    %vm384 = vcmp.eq.s32.totalorder %v43, %v346
    %vm385 = vcmp.eq.s32.totalorder %v43, %v349
    %vm386 = vcmp.eq.s32.totalorder %v43, %v352
    %vm387 = vcmp.eq.s32.totalorder %v43, %v355
    %vm388 = vcmp.eq.s32.totalorder %v43, %v358
    %vm389 = vcmp.eq.s32.totalorder %v43, %v361
    %vm390 = vcmp.eq.s32.totalorder %v43, %v364
    %vm391 = vcmp.eq.s32.totalorder %v43, %v367
    %vm392 = vcmp.eq.s32.totalorder %v43, %v370
    %vm393 = vcmp.eq.s32.totalorder %v43, %v373
    %vm394 = vcmp.eq.s32.totalorder %v43, %v376
    %vm395 = vcmp.eq.s32.totalorder %v43, %v379
    %v396 = vsel %vm380, 1, 0
    %v397 = vsel %vm381, 1, 0
    %v398 = vsel %vm382, 1, 0
    %v399 = vsel %vm383, 1, 0
    %v400 = vsel %vm384, 1, 0
    %v401 = vsel %vm385, 1, 0
    %v402 = vsel %vm386, 1, 0
    %v403 = vsel %vm387, 1, 0
    %v404 = vsel %vm388, 1, 0
    %v405 = vsel %vm389, 1, 0
    %v406 = vsel %vm390, 1, 0
    %v407 = vsel %vm391, 1, 0
    %v408 = vsel %vm392, 1, 0
    %v409 = vsel %vm393, 1, 0
    %v410 = vsel %vm394, 1, 0
    %v411 = vsel %vm395, 1, 0
    %v412 = vcvt.s32.f32 %v396
    %v413 = vcvt.s32.f32 %v397
    %v414 = vcvt.s32.f32 %v398
    %v415 = vcvt.s32.f32 %v399
    %v416 = vcvt.s32.f32 %v400
    %v417 = vcvt.s32.f32 %v401
    %v418 = vcvt.s32.f32 %v402
    %v419 = vcvt.s32.f32 %v403
    %v420 = vcvt.s32.f32 %v404
    %v421 = vcvt.s32.f32 %v405
    %v422 = vcvt.s32.f32 %v406
    %v423 = vcvt.s32.f32 %v407
    %v424 = vcvt.s32.f32 %v408
    %v425 = vcvt.s32.f32 %v409
    %v426 = vcvt.s32.f32 %v410
    %v427 = vcvt.s32.f32 %v411
    %v428 = vld [vmem:[#allocation2] sm:$0xff]
    %v429 = vld [vmem:[#allocation2 + $0x8] sm:$0xff]
    %v430 = vld [vmem:[#allocation2 + $0x10] sm:$0xff]
    %v431 = vld [vmem:[#allocation2 + $0x18] sm:$0xff]
    %v432 = vld [vmem:[#allocation2 + $0x20] sm:$0xff]
    %v433 = vld [vmem:[#allocation2 + $0x28] sm:$0xff]
    %v434 = vld [vmem:[#allocation2 + $0x30] sm:$0xff]
    %v435 = vld [vmem:[#allocation2 + $0x38] sm:$0xff]
    %v436 = vld [vmem:[#allocation2 + $0x40] sm:$0xff]
    %v437 = vld [vmem:[#allocation2 + $0x48] sm:$0xff]
    %v438 = vld [vmem:[#allocation2 + $0x50] sm:$0xff]
    %v439 = vld [vmem:[#allocation2 + $0x58] sm:$0xff]
    %v440 = vld [vmem:[#allocation2 + $0x60] sm:$0xff]
    %v441 = vld [vmem:[#allocation2 + $0x68] sm:$0xff]
    %v442 = vld [vmem:[#allocation2 + $0x70] sm:$0xff]
    %v443 = vld [vmem:[#allocation2 + $0x78] sm:$0xff]
    %v444 = vld [vmem:[#allocation2 + $0x80] sm:$0xff]
    %v445 = vld [vmem:[#allocation2 + $0x88] sm:$0xff]
    %v446 = vld [vmem:[#allocation2 + $0x90] sm:$0xff]
    %v447 = vld [vmem:[#allocation2 + $0x98] sm:$0xff]
    %v448 = vld [vmem:[#allocation2 + $0xa0] sm:$0xff]
    %v449 = vld [vmem:[#allocation2 + $0xa8] sm:$0xff]
    %v450 = vld [vmem:[#allocation2 + $0xb0] sm:$0xff]
    %v451 = vld [vmem:[#allocation2 + $0xb8] sm:$0xff]
    %v452 = vld [vmem:[#allocation2 + $0xc0] sm:$0xff]
    %v453 = vld [vmem:[#allocation2 + $0xc8] sm:$0xff]
    %v454 = vld [vmem:[#allocation2 + $0xd0] sm:$0xff]
    %v455 = vld [vmem:[#allocation2 + $0xd8] sm:$0xff]
    %v456 = vld [vmem:[#allocation2 + $0xe0] sm:$0xff]
    %v457 = vld [vmem:[#allocation2 + $0xe8] sm:$0xff]
    %v458 = vld [vmem:[#allocation2 + $0xf0] sm:$0xff]
    %v459 = vld [vmem:[#allocation2 + $0xf8] sm:$0xff]
    %v460 = vld [vmem:[#allocation2 + $0x100] sm:$0xff]
    %v461 = vld [vmem:[#allocation2 + $0x108] sm:$0xff]
    %v462 = vld [vmem:[#allocation2 + $0x110] sm:$0xff]
    %v463 = vld [vmem:[#allocation2 + $0x118] sm:$0xff]
    %v464 = vld [vmem:[#allocation2 + $0x120] sm:$0xff]
    %v465 = vld [vmem:[#allocation2 + $0x128] sm:$0xff]
    %v466 = vld [vmem:[#allocation2 + $0x130] sm:$0xff]
    %v467 = vld [vmem:[#allocation2 + $0x138] sm:$0xff]
    %v468 = vld [vmem:[#allocation2 + $0x140] sm:$0xff]
    %v469 = vld [vmem:[#allocation2 + $0x148] sm:$0xff]
    %v470 = vld [vmem:[#allocation2 + $0x150] sm:$0xff]
    %v471 = vld [vmem:[#allocation2 + $0x158] sm:$0xff]
    %v472 = vld [vmem:[#allocation2 + $0x160] sm:$0xff]
    %v473 = vld [vmem:[#allocation2 + $0x168] sm:$0xff]
    %v474 = vld [vmem:[#allocation2 + $0x170] sm:$0xff]
    %v475 = vld [vmem:[#allocation2 + $0x178] sm:$0xff]
    %v476 = vld [vmem:[#allocation2 + $0x180] sm:$0xff]
    %v477 = vld [vmem:[#allocation2 + $0x188] sm:$0xff]
    %v478 = vld [vmem:[#allocation2 + $0x190] sm:$0xff]
    %v479 = vld [vmem:[#allocation2 + $0x198] sm:$0xff]
    %v480 = vld [vmem:[#allocation2 + $0x1a0] sm:$0xff]
    %v481 = vld [vmem:[#allocation2 + $0x1a8] sm:$0xff]
    %v482 = vld [vmem:[#allocation2 + $0x1b0] sm:$0xff]
    %v483 = vld [vmem:[#allocation2 + $0x1b8] sm:$0xff]
    %v484 = vld [vmem:[#allocation2 + $0x1c0] sm:$0xff]
    %v485 = vld [vmem:[#allocation2 + $0x1c8] sm:$0xff]
    %v486 = vld [vmem:[#allocation2 + $0x1d0] sm:$0xff]
    %v487 = vld [vmem:[#allocation2 + $0x1d8] sm:$0xff]
    %v488 = vld [vmem:[#allocation2 + $0x1e0] sm:$0xff]
    %v489 = vld [vmem:[#allocation2 + $0x1e8] sm:$0xff]
    %v490 = vld [vmem:[#allocation2 + $0x1f0] sm:$0xff]
    %v491 = vld [vmem:[#allocation2 + $0x1f8] sm:$0xff]
    %492 = vmatprep.subr.mxu0 0.0
    %493 = vmatpush1.msra.mxu0 %v443
    %494 = vmatprep.subr.mxu0 0.0
    %495 = vmatpush1.msra.mxu0 %v442
    %496 = vmatprep.subr.mxu0 0.0
    %497 = vmatpush1.msra.mxu0 %v441
    %498 = vmatprep.subr.mxu0 0.0
    %499 = vmatpush1.msra.mxu0 %v440
    %500 = vmatprep.subr.mxu0 0.0
    %501 = vmatpush1.msra.mxu0 %v439
    %502 = vmatprep.subr.mxu0 0.0
    %503 = vmatpush1.msra.mxu0 %v438
    %504 = vmatprep.subr.mxu0 0.0
    %505 = vmatpush1.msra.mxu0 %v437
    %506 = vmatprep.subr.mxu0 0.0
    %507 = vmatpush1.msra.mxu0 %v436
    %508 = vmatprep.subr.mxu0 0.0
    %509 = vmatpush1.msra.mxu0 %v435
    %510 = vmatprep.subr.mxu0 0.0
    %511 = vmatpush1.msra.mxu0 %v434
    %512 = vmatprep.subr.mxu0 0.0
    %513 = vmatpush1.msra.mxu0 %v433
    %514 = vmatprep.subr.mxu0 0.0
    %515 = vmatpush1.msra.mxu0 %v432
    %516 = vmatprep.subr.mxu0 0.0
    %517 = vmatpush1.msra.mxu0 %v431
    %518 = vmatprep.subr.mxu0 0.0
    %519 = vmatpush1.msra.mxu0 %v430
    %520 = vmatprep.subr.mxu0 0.0
    %521 = vmatpush1.msra.mxu0 %v429
    %522 = vmatprep.subr.mxu0 0.0
    %523 = vmatpush1.msra.mxu0 %v428
    %524 = vmatprep.subr.mxu0 0.0
    %525 = vmatpush2.msra.mxu0 %v459
    %526 = vmatprep.subr.mxu0 0.0
    %527 = vmatpush2.msra.mxu0 %v458
    %528 = vmatprep.subr.mxu0 0.0
    %529 = vmatpush2.msra.mxu0 %v457
    %530 = vmatprep.subr.mxu0 0.0
    %531 = vmatpush2.msra.mxu0 %v456
    %532 = vmatprep.subr.mxu0 0.0
    %533 = vmatpush2.msra.mxu0 %v455
    %534 = vmatprep.subr.mxu0 0.0
    %535 = vmatpush2.msra.mxu0 %v454
    %536 = vmatprep.subr.mxu0 0.0
    %537 = vmatpush2.msra.mxu0 %v453
    %538 = vmatprep.subr.mxu0 0.0
    %539 = vmatpush2.msra.mxu0 %v452
    %540 = vmatprep.subr.mxu0 0.0
    %541 = vmatpush2.msra.mxu0 %v451
    %542 = vmatprep.subr.mxu0 0.0
    %543 = vmatpush2.msra.mxu0 %v450
    %544 = vmatprep.subr.mxu0 0.0
    %545 = vmatpush2.msra.mxu0 %v449
    %546 = vmatprep.subr.mxu0 0.0
    %547 = vmatpush2.msra.mxu0 %v448
    %548 = vmatprep.subr.mxu0 0.0
    %549 = vmatpush2.msra.mxu0 %v447
    %550 = vmatprep.subr.mxu0 0.0
    %551 = vmatpush2.msra.mxu0 %v446
    %552 = vmatprep.subr.mxu0 0.0
    %553 = vmatpush2.msra.mxu0 %v445
    %554 = vmatprep.subr.mxu0 0.0
    %555 = vmatpush2.msra.mxu0 %v444
    %556 = vmatprep.mubr.f32.mxu0 %v220
    %557 = vmatmul.mubr.f32.gmra.mxu0 %v124
    %v558 = vpop.f32.mrf.mxu0
    %v559 = vadd.f32 0.0, %v558
    %v560 = vpop.f32.mrf.mxu0
    %561 = vmatprep.mubr.f32.mxu0 %v221
    %562 = vmatmul.mubr.f32.gmra.mxu0 %v125
    %v563 = vpop.f32.mrf.mxu0
    %v564 = vadd.f32 0.0, %v563
    %v565 = vpop.f32.mrf.mxu0
    %566 = vmatprep.mubr.f32.mxu0 %v222
    %567 = vmatmul.mubr.f32.gmra.mxu0 %v126
    %v568 = vpop.f32.mrf.mxu0
    %v569 = vadd.f32 0.0, %v568
    %v570 = vpop.f32.mrf.mxu0
    %571 = vmatprep.mubr.f32.mxu0 %v223
    %572 = vmatmul.mubr.f32.gmra.mxu0 %v127
    %v573 = vpop.f32.mrf.mxu0
    %v574 = vadd.f32 0.0, %v573
    %v575 = vpop.f32.mrf.mxu0
    %576 = vmatprep.mubr.f32.mxu0 %v224
    %577 = vmatmul.mubr.f32.gmra.mxu0 %v128
    %v578 = vpop.f32.mrf.mxu0
    %v579 = vadd.f32 0.0, %v578
    %v580 = vpop.f32.mrf.mxu0
    %581 = vmatprep.mubr.f32.mxu0 %v225
    %582 = vmatmul.mubr.f32.gmra.mxu0 %v129
    %v583 = vpop.f32.mrf.mxu0
    %v584 = vadd.f32 0.0, %v583
    %v585 = vpop.f32.mrf.mxu0
    %586 = vmatprep.mubr.f32.mxu0 %v226
    %587 = vmatmul.mubr.f32.gmra.mxu0 %v130
    %v588 = vpop.f32.mrf.mxu0
    %v589 = vadd.f32 0.0, %v588
    %v590 = vpop.f32.mrf.mxu0
    %591 = vmatprep.mubr.f32.mxu0 %v227
    %592 = vmatmul.mubr.f32.gmra.mxu0 %v131
    %v593 = vpop.f32.mrf.mxu0
    %v594 = vadd.f32 0.0, %v593
    %v595 = vpop.f32.mrf.mxu0
    %596 = vmatprep.mubr.f32.mxu0 %v228
    %597 = vmatmul.mubr.f32.gmra.mxu0 %v132
    %v598 = vpop.f32.mrf.mxu0
    %v599 = vadd.f32 0.0, %v598
    %v600 = vpop.f32.mrf.mxu0
    %601 = vmatprep.mubr.f32.mxu0 %v229
    %602 = vmatmul.mubr.f32.gmra.mxu0 %v133
    %v603 = vpop.f32.mrf.mxu0
    %v604 = vadd.f32 0.0, %v603
    %v605 = vpop.f32.mrf.mxu0
    %606 = vmatprep.mubr.f32.mxu0 %v230
    %607 = vmatmul.mubr.f32.gmra.mxu0 %v134
    %v608 = vpop.f32.mrf.mxu0
    %v609 = vadd.f32 0.0, %v608
    %v610 = vpop.f32.mrf.mxu0
    %611 = vmatprep.mubr.f32.mxu0 %v231
    %612 = vmatmul.mubr.f32.gmra.mxu0 %v135
    %v613 = vpop.f32.mrf.mxu0
    %v614 = vadd.f32 0.0, %v613
    %v615 = vpop.f32.mrf.mxu0
    %616 = vmatprep.mubr.f32.mxu0 %v232
    %617 = vmatmul.mubr.f32.gmra.mxu0 %v136
    %v618 = vpop.f32.mrf.mxu0
    %v619 = vadd.f32 0.0, %v618
    %v620 = vpop.f32.mrf.mxu0
    %621 = vmatprep.mubr.f32.mxu0 %v233
    %622 = vmatmul.mubr.f32.gmra.mxu0 %v137
    %v623 = vpop.f32.mrf.mxu0
    %v624 = vadd.f32 0.0, %v623
    %v625 = vpop.f32.mrf.mxu0
    %626 = vmatprep.mubr.f32.mxu0 %v234
    %627 = vmatmul.mubr.f32.gmra.mxu0 %v138
    %v628 = vpop.f32.mrf.mxu0
    %v629 = vadd.f32 0.0, %v628
    %v630 = vpop.f32.mrf.mxu0
    %631 = vmatprep.mubr.f32.mxu0 %v235
    %632 = vmatmul.mubr.f32.gmra.mxu0 %v139
    %v633 = vpop.f32.mrf.mxu0
    %v634 = vadd.f32 0.0, %v633
    %v635 = vpop.f32.mrf.mxu0
    %636 = vdwg.mxu0
    %637 = vmatprep.subr.mxu0 0.0
    %638 = vmatpush1.msra.mxu0 %v475
    %639 = vmatprep.subr.mxu0 0.0
    %640 = vmatpush1.msra.mxu0 %v474
    %641 = vmatprep.subr.mxu0 0.0
    %642 = vmatpush1.msra.mxu0 %v473
    %643 = vmatprep.subr.mxu0 0.0
    %644 = vmatpush1.msra.mxu0 %v472
    %645 = vmatprep.subr.mxu0 0.0
    %646 = vmatpush1.msra.mxu0 %v471
    %647 = vmatprep.subr.mxu0 0.0
    %648 = vmatpush1.msra.mxu0 %v470
    %649 = vmatprep.subr.mxu0 0.0
    %650 = vmatpush1.msra.mxu0 %v469
    %651 = vmatprep.subr.mxu0 0.0
    %652 = vmatpush1.msra.mxu0 %v468
    %653 = vmatprep.subr.mxu0 0.0
    %654 = vmatpush1.msra.mxu0 %v467
    %655 = vmatprep.subr.mxu0 0.0
    %656 = vmatpush1.msra.mxu0 %v466
    %657 = vmatprep.subr.mxu0 0.0
    %658 = vmatpush1.msra.mxu0 %v465
    %659 = vmatprep.subr.mxu0 0.0
    %660 = vmatpush1.msra.mxu0 %v464
    %661 = vmatprep.subr.mxu0 0.0
    %662 = vmatpush1.msra.mxu0 %v463
    %663 = vmatprep.subr.mxu0 0.0
    %664 = vmatpush1.msra.mxu0 %v462
    %665 = vmatprep.subr.mxu0 0.0
    %666 = vmatpush1.msra.mxu0 %v461
    %667 = vmatprep.subr.mxu0 0.0
    %668 = vmatpush1.msra.mxu0 %v460
    %669 = vmatprep.subr.mxu0 0.0
    %670 = vmatpush2.msra.mxu0 %v491
    %671 = vmatprep.subr.mxu0 0.0
    %672 = vmatpush2.msra.mxu0 %v490
    %673 = vmatprep.subr.mxu0 0.0
    %674 = vmatpush2.msra.mxu0 %v489
    %675 = vmatprep.subr.mxu0 0.0
    %676 = vmatpush2.msra.mxu0 %v488
    %677 = vmatprep.subr.mxu0 0.0
    %678 = vmatpush2.msra.mxu0 %v487
    %679 = vmatprep.subr.mxu0 0.0
    %680 = vmatpush2.msra.mxu0 %v486
    %681 = vmatprep.subr.mxu0 0.0
    %682 = vmatpush2.msra.mxu0 %v485
    %683 = vmatprep.subr.mxu0 0.0
    %684 = vmatpush2.msra.mxu0 %v484
    %685 = vmatprep.subr.mxu0 0.0
    %686 = vmatpush2.msra.mxu0 %v483
    %687 = vmatprep.subr.mxu0 0.0
    %688 = vmatpush2.msra.mxu0 %v482
    %689 = vmatprep.subr.mxu0 0.0
    %690 = vmatpush2.msra.mxu0 %v481
    %691 = vmatprep.subr.mxu0 0.0
    %692 = vmatpush2.msra.mxu0 %v480
    %693 = vmatprep.subr.mxu0 0.0
    %694 = vmatpush2.msra.mxu0 %v479
    %695 = vmatprep.subr.mxu0 0.0
    %696 = vmatpush2.msra.mxu0 %v478
    %697 = vmatprep.subr.mxu0 0.0
    %698 = vmatpush2.msra.mxu0 %v477
    %699 = vmatprep.subr.mxu0 0.0
    %700 = vmatpush2.msra.mxu0 %v476
    %701 = vmatprep.mubr.f32.mxu0 %v412
    %702 = vmatmul.mubr.f32.gmra.mxu0 %v316
    %v703 = vpop.f32.mrf.mxu0
    %v704 = vadd.f32 %v559, %v703
    %v705 = vpop.f32.mrf.mxu0
    %706 = vmatprep.mubr.f32.mxu0 %v413
    %707 = vmatmul.mubr.f32.gmra.mxu0 %v317
    %v708 = vpop.f32.mrf.mxu0
    %v709 = vadd.f32 %v564, %v708
    %v710 = vpop.f32.mrf.mxu0
    %711 = vmatprep.mubr.f32.mxu0 %v414
    %712 = vmatmul.mubr.f32.gmra.mxu0 %v318
    %v713 = vpop.f32.mrf.mxu0
    %v714 = vadd.f32 %v569, %v713
    %v715 = vpop.f32.mrf.mxu0
    %716 = vmatprep.mubr.f32.mxu0 %v415
    %717 = vmatmul.mubr.f32.gmra.mxu0 %v319
    %v718 = vpop.f32.mrf.mxu0
    %v719 = vadd.f32 %v574, %v718
    %v720 = vpop.f32.mrf.mxu0
    %721 = vmatprep.mubr.f32.mxu0 %v416
    %722 = vmatmul.mubr.f32.gmra.mxu0 %v320
    %v723 = vpop.f32.mrf.mxu0
    %v724 = vadd.f32 %v579, %v723
    %v725 = vpop.f32.mrf.mxu0
    %726 = vmatprep.mubr.f32.mxu0 %v417
    %727 = vmatmul.mubr.f32.gmra.mxu0 %v321
    %v728 = vpop.f32.mrf.mxu0
    %v729 = vadd.f32 %v584, %v728
    %v730 = vpop.f32.mrf.mxu0
    %731 = vmatprep.mubr.f32.mxu0 %v418
    %732 = vmatmul.mubr.f32.gmra.mxu0 %v322
    %v733 = vpop.f32.mrf.mxu0
    %v734 = vadd.f32 %v589, %v733
    %v735 = vpop.f32.mrf.mxu0
    %736 = vmatprep.mubr.f32.mxu0 %v419
    %737 = vmatmul.mubr.f32.gmra.mxu0 %v323
    %v738 = vpop.f32.mrf.mxu0
    %v739 = vadd.f32 %v594, %v738
    %v740 = vpop.f32.mrf.mxu0
    %741 = vmatprep.mubr.f32.mxu0 %v420
    %742 = vmatmul.mubr.f32.gmra.mxu0 %v324
    %v743 = vpop.f32.mrf.mxu0
    %v744 = vadd.f32 %v599, %v743
    %v745 = vpop.f32.mrf.mxu0
    %746 = vmatprep.mubr.f32.mxu0 %v421
    %747 = vmatmul.mubr.f32.gmra.mxu0 %v325
    %v748 = vpop.f32.mrf.mxu0
    %v749 = vadd.f32 %v604, %v748
    %v750 = vpop.f32.mrf.mxu0
    %751 = vmatprep.mubr.f32.mxu0 %v422
    %752 = vmatmul.mubr.f32.gmra.mxu0 %v326
    %v753 = vpop.f32.mrf.mxu0
    %v754 = vadd.f32 %v609, %v753
    %v755 = vpop.f32.mrf.mxu0
    %756 = vmatprep.mubr.f32.mxu0 %v423
    %757 = vmatmul.mubr.f32.gmra.mxu0 %v327
    %v758 = vpop.f32.mrf.mxu0
    %v759 = vadd.f32 %v614, %v758
    %v760 = vpop.f32.mrf.mxu0
    %761 = vmatprep.mubr.f32.mxu0 %v424
    %762 = vmatmul.mubr.f32.gmra.mxu0 %v328
    %v763 = vpop.f32.mrf.mxu0
    %v764 = vadd.f32 %v619, %v763
    %v765 = vpop.f32.mrf.mxu0
    %766 = vmatprep.mubr.f32.mxu0 %v425
    %767 = vmatmul.mubr.f32.gmra.mxu0 %v329
    %v768 = vpop.f32.mrf.mxu0
    %v769 = vadd.f32 %v624, %v768
    %v770 = vpop.f32.mrf.mxu0
    %771 = vmatprep.mubr.f32.mxu0 %v426
    %772 = vmatmul.mubr.f32.gmra.mxu0 %v330
    %v773 = vpop.f32.mrf.mxu0
    %v774 = vadd.f32 %v629, %v773
    %v775 = vpop.f32.mrf.mxu0
    %776 = vmatprep.mubr.f32.mxu0 %v427
    %777 = vmatmul.mubr.f32.gmra.mxu0 %v331
    %v778 = vpop.f32.mrf.mxu0
    %v779 = vadd.f32 %v634, %v778
    %v780 = vpop.f32.mrf.mxu0
    %781 = vdwg.mxu0
    %782 = vst [vmem:[#allocation5] sm:$0xff] %v704
    %783 = vst [vmem:[#allocation5 + $0x8] sm:$0xff] %v709
    %784 = vst [vmem:[#allocation5 + $0x10] sm:$0xff] %v714
    %785 = vst [vmem:[#allocation5 + $0x18] sm:$0xff] %v719
    %786 = vst [vmem:[#allocation5 + $0x20] sm:$0xff] %v724
    %787 = vst [vmem:[#allocation5 + $0x28] sm:$0xff] %v729
    %788 = vst [vmem:[#allocation5 + $0x30] sm:$0xff] %v734
    %789 = vst [vmem:[#allocation5 + $0x38] sm:$0xff] %v739
    %790 = vst [vmem:[#allocation5 + $0x40] sm:$0xff] %v744
    %791 = vst [vmem:[#allocation5 + $0x48] sm:$0xff] %v749
    %792 = vst [vmem:[#allocation5 + $0x50] sm:$0xff] %v754
    %793 = vst [vmem:[#allocation5 + $0x58] sm:$0xff] %v759
    %794 = vst [vmem:[#allocation5 + $0x60] sm:$0xff] %v764
    %795 = vst [vmem:[#allocation5 + $0x68] sm:$0xff] %v769
    %796 = vst [vmem:[#allocation5 + $0x70] sm:$0xff] %v774
    %797 = vst [vmem:[#allocation5 + $0x78] sm:$0xff] %v779
    // Predicated region
    $region14: #{tpu_custom_call.1} parent=1 // pred_check
      _
    $region15: #{tpu_custom_call.1} parent=1 // pred_check_branch
      %799 = sbr.rel (0) target = $region17
    $region16: #{tpu_custom_call.1} parent=1 // pred_region
      %s801 = ssub.s32 2048, 2048
      %802 = vsyncadd [#allocation4], %s801
      %s803 = sshll.u32 [#allocation5], 4
      %s804 = int_to_ptr.vmem [resolvable:$true] %s803
      %809 = dma.vmem_to_hbm [thread:$0]  %s804, 2048, %s2, [#allocation4], 128, 128, 8
    $region17: #{tpu_custom_call.1} parent=1 // pred_fallthru
      _
    // Predicated region
    $region18: #{tpu_custom_call.1} parent=1 // pred_check
      _
    $region19: #{tpu_custom_call.1} parent=1 // pred_check_branch
      %811 = sbr.rel (0) target = $region21
    $region20: #{tpu_custom_call.1} parent=1 // pred_region
      %812 = dma.done [#allocation4], 2048
    $region21: #{tpu_custom_call.1} parent=1 // pred_fallthru
      _
    %813 = vsyncpa [#allocation3], 1
    %814 = vsyncpa [#allocation4], 1

// kernel: tpu_custom_call.1
$region0: #{tpu_custom_call.1}
  #allocation0 [shape = 'u32[]', space=smem, size = 0x4, offset = 0x4, fixed_abs, tag = 'smem constant byte address 0x4 - core index']
  #allocation1 [shape = 'u32[144,128]{1,0:T(1,128)}', space=vmem, size = 0x12000, scoped, tag = 'internal scratch']
  %s0 = inlined_call_operand.vmem [shape: s32[128,4], index: 0, kind: input, shape index: {}]
  %s1 = inlined_call_operand.hbm [shape: f32[512,128], index: 1, kind: input, shape index: {}]
  %s2 = inlined_call_operand.hbm [shape: f32[128,128], index: 2, kind: output, shape index: {}]
  %s3 = sld [smem:[#allocation0]]
  $region22: #{tpu_custom_call.1} parent=0
    _
  %s5 = ssub.s32 1, %s3
  %s6 = scalar_select 0, %s5, %s3
  $region1: #{tpu_custom_call.1} parent=0
    #allocation2 [shape = 'u8[262144]{0}', space=vmem, size = 0x40000, scoped, tag = 'input window, operand 1, single buffered']
    #allocation3 [shape = 's32[1]{0}', space=sflag, size = 0x4, scoped, tag = 'scoped memory for tpu_custom_call.1']
    #allocation4 [shape = 's32[1]{0}', space=sflag, size = 0x4, scoped, tag = 'scoped memory for tpu_custom_call.1']
    #allocation5 [shape = 'u8[65536]{0}', space=vmem, size = 0x10000, scoped, tag = 'output window, operand 0, single buffered']
    %7 = vsyncpa [#allocation3], 0
    %8 = vsyncpa [#allocation4], 0
    // Predicated region
    $region2: #{tpu_custom_call.1} parent=1 // pred_check
      _
    $region3: #{tpu_custom_call.1} parent=1 // pred_check_branch
      %10 = sbr.rel (0) target = $region5
    $region4: #{tpu_custom_call.1} parent=1 // pred_region
      _
    $region5: #{tpu_custom_call.1} parent=1 // pred_fallthru
      _
    // Predicated region
    $region6: #{tpu_custom_call.1} parent=1 // pred_check
      _
    $region7: #{tpu_custom_call.1} parent=1 // pred_check_branch
      %12 = sbr.rel (0) target = $region9
    $region8: #{tpu_custom_call.1} parent=1 // pred_region
      %s14 = ssub.s32 8192, 8192
      %15 = vsyncadd [#allocation3], %s14
      %s16 = sshll.u32 [#allocation2], 4
      %s17 = int_to_ptr.vmem [resolvable:$true] %s16
      %22 = dma.hbm_to_vmem [thread:$0]  %s1, 8192, %s17, [#allocation3], 128, 128, 8
    $region9: #{tpu_custom_call.1} parent=1 // pred_fallthru
      _
    // Predicated region
    $region10: #{tpu_custom_call.1} parent=1 // pred_check
      _
    $region11: #{tpu_custom_call.1} parent=1 // pred_check_branch
      %24 = sbr.rel (0) target = $region13
    $region12: #{tpu_custom_call.1} parent=1 // pred_region
      %25 = dma.done [#allocation3], 8192
    $region13: #{tpu_custom_call.1} parent=1 // pred_fallthru
      _
    %v26 = vld [vmem:[%s0] sm:$0xff]
    %v27 = vld [vmem:[%s0 + $0x8] sm:$0xff]
    %v28 = vld [vmem:[%s0 + $0x10] sm:$0xff]
    %v29 = vld [vmem:[%s0 + $0x18] sm:$0xff]
    %v30 = vld [vmem:[%s0 + $0x20] sm:$0xff]
    %v31 = vld [vmem:[%s0 + $0x28] sm:$0xff]
    %v32 = vld [vmem:[%s0 + $0x30] sm:$0xff]
    %v33 = vld [vmem:[%s0 + $0x38] sm:$0xff]
    %v34 = vld [vmem:[%s0 + $0x40] sm:$0xff]
    %v35 = vld [vmem:[%s0 + $0x48] sm:$0xff]
    %v36 = vld [vmem:[%s0 + $0x50] sm:$0xff]
    %v37 = vld [vmem:[%s0 + $0x58] sm:$0xff]
    %v38 = vld [vmem:[%s0 + $0x60] sm:$0xff]
    %v39 = vld [vmem:[%s0 + $0x68] sm:$0xff]
    %v40 = vld [vmem:[%s0 + $0x70] sm:$0xff]
    %v41 = vld [vmem:[%s0 + $0x78] sm:$0xff]
    %v42 = vlaneseq
    %v43 = vand.u32 %v42, 127
    %44 = vset.pattern.permute.xlu0 0
    %45 = vperm.xlu0 %44, %v26
    %v46 = vpop.permute.xlu0 %45
    %47 = vset.pattern.permute.xlu0 0
    %48 = vperm.xlu0 %47, %v27
    %v49 = vpop.permute.xlu0 %48
    %50 = vset.pattern.permute.xlu0 0
    %51 = vperm.xlu0 %50, %v28
    %v52 = vpop.permute.xlu0 %51
    %53 = vset.pattern.permute.xlu0 0
    %54 = vperm.xlu0 %53, %v29
    %v55 = vpop.permute.xlu0 %54
    %56 = vset.pattern.permute.xlu0 0
    %57 = vperm.xlu0 %56, %v30
    %v58 = vpop.permute.xlu0 %57
    %59 = vset.pattern.permute.xlu0 0
    %60 = vperm.xlu0 %59, %v31
    %v61 = vpop.permute.xlu0 %60
    %62 = vset.pattern.permute.xlu0 0
    %63 = vperm.xlu0 %62, %v32
    %v64 = vpop.permute.xlu0 %63
    %65 = vset.pattern.permute.xlu0 0
    %66 = vperm.xlu0 %65, %v33
    %v67 = vpop.permute.xlu0 %66
    %68 = vset.pattern.permute.xlu0 0
    %69 = vperm.xlu0 %68, %v34
    %v70 = vpop.permute.xlu0 %69
    %71 = vset.pattern.permute.xlu0 0
    %72 = vperm.xlu0 %71, %v35
    %v73 = vpop.permute.xlu0 %72
    %74 = vset.pattern.permute.xlu0 0
    %75 = vperm.xlu0 %74, %v36
    %v76 = vpop.permute.xlu0 %75
    %77 = vset.pattern.permute.xlu0 0
    %78 = vperm.xlu0 %77, %v37
    %v79 = vpop.permute.xlu0 %78
    %80 = vset.pattern.permute.xlu0 0
    %81 = vperm.xlu0 %80, %v38
    %v82 = vpop.permute.xlu0 %81
    %83 = vset.pattern.permute.xlu0 0
    %84 = vperm.xlu0 %83, %v39
    %v85 = vpop.permute.xlu0 %84
    %86 = vset.pattern.permute.xlu0 0
    %87 = vperm.xlu0 %86, %v40
    %v88 = vpop.permute.xlu0 %87
    %89 = vset.pattern.permute.xlu0 0
    %90 = vperm.xlu0 %89, %v41
    %v91 = vpop.permute.xlu0 %90
    %vm92 = vcmp.eq.s32.totalorder %v43, %v46
    %vm93 = vcmp.eq.s32.totalorder %v43, %v49
    %vm94 = vcmp.eq.s32.totalorder %v43, %v52
    %vm95 = vcmp.eq.s32.totalorder %v43, %v55
    %vm96 = vcmp.eq.s32.totalorder %v43, %v58
    %vm97 = vcmp.eq.s32.totalorder %v43, %v61
    %vm98 = vcmp.eq.s32.totalorder %v43, %v64
    %vm99 = vcmp.eq.s32.totalorder %v43, %v67
    %vm100 = vcmp.eq.s32.totalorder %v43, %v70
    %vm101 = vcmp.eq.s32.totalorder %v43, %v73
    %vm102 = vcmp.eq.s32.totalorder %v43, %v76
    %vm103 = vcmp.eq.s32.totalorder %v43, %v79
    %vm104 = vcmp.eq.s32.totalorder %v43, %v82
    %vm105 = vcmp.eq.s32.totalorder %v43, %v85
    %vm106 = vcmp.eq.s32.totalorder %v43, %v88
    %vm107 = vcmp.eq.s32.totalorder %v43, %v91
    %v108 = vsel %vm92, 1, 0
    %v109 = vsel %vm93, 1, 0
    %v110 = vsel %vm94, 1, 0
    %v111 = vsel %vm95, 1, 0
    %v112 = vsel %vm96, 1, 0
    %v113 = vsel %vm97, 1, 0
    %v114 = vsel %vm98, 1, 0
    %v115 = vsel %vm99, 1, 0
    %v116 = vsel %vm100, 1, 0
    %v117 = vsel %vm101, 1, 0
    %v118 = vsel %vm102, 1, 0
    %v119 = vsel %vm103, 1, 0
    %v120 = vsel %vm104, 1, 0
    %v121 = vsel %vm105, 1, 0
    %v122 = vsel %vm106, 1, 0
    %v123 = vsel %vm107, 1, 0
    %v124 = vcvt.s32.f32 %v108
    %v125 = vcvt.s32.f32 %v109
    %v126 = vcvt.s32.f32 %v110
    %v127 = vcvt.s32.f32 %v111
    %v128 = vcvt.s32.f32 %v112
    %v129 = vcvt.s32.f32 %v113
    %v130 = vcvt.s32.f32 %v114
    %v131 = vcvt.s32.f32 %v115
    %v132 = vcvt.s32.f32 %v116
    %v133 = vcvt.s32.f32 %v117
    %v134 = vcvt.s32.f32 %v118
    %v135 = vcvt.s32.f32 %v119
    %v136 = vcvt.s32.f32 %v120
    %v137 = vcvt.s32.f32 %v121
    %v138 = vcvt.s32.f32 %v122
    %v139 = vcvt.s32.f32 %v123
    %140 = vset.pattern.permute.xlu0 1
    %141 = vperm.xlu0 %140, %v26
    %v142 = vpop.permute.xlu0 %141
    %143 = vset.pattern.permute.xlu0 1
    %144 = vperm.xlu0 %143, %v27
    %v145 = vpop.permute.xlu0 %144
    %146 = vset.pattern.permute.xlu0 1
    %147 = vperm.xlu0 %146, %v28
    %v148 = vpop.permute.xlu0 %147
    %149 = vset.pattern.permute.xlu0 1
    %150 = vperm.xlu0 %149, %v29
    %v151 = vpop.permute.xlu0 %150
    %152 = vset.pattern.permute.xlu0 1
    %153 = vperm.xlu0 %152, %v30
    %v154 = vpop.permute.xlu0 %153
    %155 = vset.pattern.permute.xlu0 1
    %156 = vperm.xlu0 %155, %v31
    %v157 = vpop.permute.xlu0 %156
    %158 = vset.pattern.permute.xlu0 1
    %159 = vperm.xlu0 %158, %v32
    %v160 = vpop.permute.xlu0 %159
    %161 = vset.pattern.permute.xlu0 1
    %162 = vperm.xlu0 %161, %v33
    %v163 = vpop.permute.xlu0 %162
    %164 = vset.pattern.permute.xlu0 1
    %165 = vperm.xlu0 %164, %v34
    %v166 = vpop.permute.xlu0 %165
    %167 = vset.pattern.permute.xlu0 1
    %168 = vperm.xlu0 %167, %v35
    %v169 = vpop.permute.xlu0 %168
    %170 = vset.pattern.permute.xlu0 1
    %171 = vperm.xlu0 %170, %v36
    %v172 = vpop.permute.xlu0 %171
    %173 = vset.pattern.permute.xlu0 1
    %174 = vperm.xlu0 %173, %v37
    %v175 = vpop.permute.xlu0 %174
    %176 = vset.pattern.permute.xlu0 1
    %177 = vperm.xlu0 %176, %v38
    %v178 = vpop.permute.xlu0 %177
    %179 = vset.pattern.permute.xlu0 1
    %180 = vperm.xlu0 %179, %v39
    %v181 = vpop.permute.xlu0 %180
    %182 = vset.pattern.permute.xlu0 1
    %183 = vperm.xlu0 %182, %v40
    %v184 = vpop.permute.xlu0 %183
    %185 = vset.pattern.permute.xlu0 1
    %186 = vperm.xlu0 %185, %v41
    %v187 = vpop.permute.xlu0 %186
    %vm188 = vcmp.eq.s32.totalorder %v43, %v142
    %vm189 = vcmp.eq.s32.totalorder %v43, %v145
    %vm190 = vcmp.eq.s32.totalorder %v43, %v148
    %vm191 = vcmp.eq.s32.totalorder %v43, %v151
    %vm192 = vcmp.eq.s32.totalorder %v43, %v154
    %vm193 = vcmp.eq.s32.totalorder %v43, %v157
    %vm194 = vcmp.eq.s32.totalorder %v43, %v160
    %vm195 = vcmp.eq.s32.totalorder %v43, %v163
    %vm196 = vcmp.eq.s32.totalorder %v43, %v166
    %vm197 = vcmp.eq.s32.totalorder %v43, %v169
    %vm198 = vcmp.eq.s32.totalorder %v43, %v172
    %vm199 = vcmp.eq.s32.totalorder %v43, %v175
    %vm200 = vcmp.eq.s32.totalorder %v43, %v178
    %vm201 = vcmp.eq.s32.totalorder %v43, %v181
    %vm202 = vcmp.eq.s32.totalorder %v43, %v184
    %vm203 = vcmp.eq.s32.totalorder %v43, %v187
    %v204 = vsel %vm188, 1, 0
    %v205 = vsel %vm189, 1, 0
    %v206 = vsel %vm190, 1, 0
    %v207 = vsel %vm191, 1, 0
    %v208 = vsel %vm192, 1, 0
    %v209 = vsel %vm193, 1, 0
    %v210 = vsel %vm194, 1, 0
    %v211 = vsel %vm195, 1, 0
    %v212 = vsel %vm196, 1, 0
    %v213 = vsel %vm197, 1, 0
    %v214 = vsel %vm198, 1, 0
    %v215 = vsel %vm199, 1, 0
    %v216 = vsel %vm200, 1, 0
    %v217 = vsel %vm201, 1, 0
    %v218 = vsel %vm202, 1, 0
    %v219 = vsel %vm203, 1, 0
    %v220 = vcvt.s32.f32 %v204
    %v221 = vcvt.s32.f32 %v205
    %v222 = vcvt.s32.f32 %v206
    %v223 = vcvt.s32.f32 %v207
    %v224 = vcvt.s32.f32 %v208
    %v225 = vcvt.s32.f32 %v209
    %v226 = vcvt.s32.f32 %v210
    %v227 = vcvt.s32.f32 %v211
    %v228 = vcvt.s32.f32 %v212
    %v229 = vcvt.s32.f32 %v213
    %v230 = vcvt.s32.f32 %v214
    %v231 = vcvt.s32.f32 %v215
    %v232 = vcvt.s32.f32 %v216
    %v233 = vcvt.s32.f32 %v217
    %v234 = vcvt.s32.f32 %v218
    %v235 = vcvt.s32.f32 %v219
    %236 = vset.pattern.permute.xlu0 2
    %237 = vperm.xlu0 %236, %v26
    %v238 = vpop.permute.xlu0 %237
    %239 = vset.pattern.permute.xlu0 2
    %240 = vperm.xlu0 %239, %v27
    %v241 = vpop.permute.xlu0 %240
    %242 = vset.pattern.permute.xlu0 2
    %243 = vperm.xlu0 %242, %v28
    %v244 = vpop.permute.xlu0 %243
    %245 = vset.pattern.permute.xlu0 2
    %246 = vperm.xlu0 %245, %v29
    %v247 = vpop.permute.xlu0 %246
    %248 = vset.pattern.permute.xlu0 2
    %249 = vperm.xlu0 %248, %v30
    %v250 = vpop.permute.xlu0 %249
    %251 = vset.pattern.permute.xlu0 2
    %252 = vperm.xlu0 %251, %v31
    %v253 = vpop.permute.xlu0 %252
    %254 = vset.pattern.permute.xlu0 2
    %255 = vperm.xlu0 %254, %v32
    %v256 = vpop.permute.xlu0 %255
    %257 = vset.pattern.permute.xlu0 2
    %258 = vperm.xlu0 %257, %v33
    %v259 = vpop.permute.xlu0 %258
    %260 = vset.pattern.permute.xlu0 2
    %261 = vperm.xlu0 %260, %v34
    %v262 = vpop.permute.xlu0 %261
    %263 = vset.pattern.permute.xlu0 2
    %264 = vperm.xlu0 %263, %v35
    %v265 = vpop.permute.xlu0 %264
    %266 = vset.pattern.permute.xlu0 2
    %267 = vperm.xlu0 %266, %v36
    %v268 = vpop.permute.xlu0 %267
    %269 = vset.pattern.permute.xlu0 2
    %270 = vperm.xlu0 %269, %v37
    %v271 = vpop.permute.xlu0 %270
    %272 = vset.pattern.permute.xlu0 2
    %273 = vperm.xlu0 %272, %v38
    %v274 = vpop.permute.xlu0 %273
    %275 = vset.pattern.permute.xlu0 2
    %276 = vperm.xlu0 %275, %v39
    %v277 = vpop.permute.xlu0 %276
    %278 = vset.pattern.permute.xlu0 2
    %279 = vperm.xlu0 %278, %v40
    %v280 = vpop.permute.xlu0 %279
    %281 = vset.pattern.permute.xlu0 2
    %282 = vperm.xlu0 %281, %v41
    %v283 = vpop.permute.xlu0 %282
    %vm284 = vcmp.eq.s32.totalorder %v43, %v238
    %vm285 = vcmp.eq.s32.totalorder %v43, %v241
    %vm286 = vcmp.eq.s32.totalorder %v43, %v244
    %vm287 = vcmp.eq.s32.totalorder %v43, %v247
    %vm288 = vcmp.eq.s32.totalorder %v43, %v250
    %vm289 = vcmp.eq.s32.totalorder %v43, %v253
    %vm290 = vcmp.eq.s32.totalorder %v43, %v256
    %vm291 = vcmp.eq.s32.totalorder %v43, %v259
    %vm292 = vcmp.eq.s32.totalorder %v43, %v262
    %vm293 = vcmp.eq.s32.totalorder %v43, %v265
    %vm294 = vcmp.eq.s32.totalorder %v43, %v268
    %vm295 = vcmp.eq.s32.totalorder %v43, %v271
    %vm296 = vcmp.eq.s32.totalorder %v43, %v274
    %vm297 = vcmp.eq.s32.totalorder %v43, %v277
    %vm298 = vcmp.eq.s32.totalorder %v43, %v280
    %vm299 = vcmp.eq.s32.totalorder %v43, %v283
    %v300 = vsel %vm284, 1, 0
    %v301 = vsel %vm285, 1, 0
    %v302 = vsel %vm286, 1, 0
    %v303 = vsel %vm287, 1, 0
    %v304 = vsel %vm288, 1, 0
    %v305 = vsel %vm289, 1, 0
    %v306 = vsel %vm290, 1, 0
    %v307 = vsel %vm291, 1, 0
    %v308 = vsel %vm292, 1, 0
    %v309 = vsel %vm293, 1, 0
    %v310 = vsel %vm294, 1, 0
    %v311 = vsel %vm295, 1, 0
    %v312 = vsel %vm296, 1, 0
    %v313 = vsel %vm297, 1, 0
    %v314 = vsel %vm298, 1, 0
    %v315 = vsel %vm299, 1, 0
    %v316 = vcvt.s32.f32 %v300
    %v317 = vcvt.s32.f32 %v301
    %v318 = vcvt.s32.f32 %v302
    %v319 = vcvt.s32.f32 %v303
    %v320 = vcvt.s32.f32 %v304
    %v321 = vcvt.s32.f32 %v305
    %v322 = vcvt.s32.f32 %v306
    %v323 = vcvt.s32.f32 %v307
    %v324 = vcvt.s32.f32 %v308
    %v325 = vcvt.s32.f32 %v309
    %v326 = vcvt.s32.f32 %v310
    %v327 = vcvt.s32.f32 %v311
    %v328 = vcvt.s32.f32 %v312
    %v329 = vcvt.s32.f32 %v313
    %v330 = vcvt.s32.f32 %v314
    %v331 = vcvt.s32.f32 %v315
    %332 = vset.pattern.permute.xlu0 3
    %333 = vperm.xlu0 %332, %v26
    %v334 = vpop.permute.xlu0 %333
    %335 = vset.pattern.permute.xlu0 3
    %336 = vperm.xlu0 %335, %v27
    %v337 = vpop.permute.xlu0 %336
    %338 = vset.pattern.permute.xlu0 3
    %339 = vperm.xlu0 %338, %v28
    %v340 = vpop.permute.xlu0 %339
    %341 = vset.pattern.permute.xlu0 3
    %342 = vperm.xlu0 %341, %v29
    %v343 = vpop.permute.xlu0 %342
    %344 = vset.pattern.permute.xlu0 3
    %345 = vperm.xlu0 %344, %v30
    %v346 = vpop.permute.xlu0 %345
    %347 = vset.pattern.permute.xlu0 3
    %348 = vperm.xlu0 %347, %v31
    %v349 = vpop.permute.xlu0 %348
    %350 = vset.pattern.permute.xlu0 3
    %351 = vperm.xlu0 %350, %v32
    %v352 = vpop.permute.xlu0 %351
    %353 = vset.pattern.permute.xlu0 3
    %354 = vperm.xlu0 %353, %v33
    %v355 = vpop.permute.xlu0 %354
    %356 = vset.pattern.permute.xlu0 3
    %357 = vperm.xlu0 %356, %v34
    %v358 = vpop.permute.xlu0 %357
    %359 = vset.pattern.permute.xlu0 3
    %360 = vperm.xlu0 %359, %v35
    %v361 = vpop.permute.xlu0 %360
    %362 = vset.pattern.permute.xlu0 3
    %363 = vperm.xlu0 %362, %v36
    %v364 = vpop.permute.xlu0 %363
    %365 = vset.pattern.permute.xlu0 3
    %366 = vperm.xlu0 %365, %v37
    %v367 = vpop.permute.xlu0 %366
    %368 = vset.pattern.permute.xlu0 3
    %369 = vperm.xlu0 %368, %v38
    %v370 = vpop.permute.xlu0 %369
    %371 = vset.pattern.permute.xlu0 3
    %372 = vperm.xlu0 %371, %v39
    %v373 = vpop.permute.xlu0 %372
    %374 = vset.pattern.permute.xlu0 3
    %375 = vperm.xlu0 %374, %v40
    %v376 = vpop.permute.xlu0 %375
    %377 = vset.pattern.permute.xlu0 3
    %378 = vperm.xlu0 %377, %v41
    %v379 = vpop.permute.xlu0 %378
    %vm380 = vcmp.eq.s32.totalorder %v43, %v334
    %vm381 = vcmp.eq.s32.totalorder %v43, %v337
    %vm382 = vcmp.eq.s32.totalorder %v43, %v340
    %vm383 = vcmp.eq.s32.totalorder %v43, %v343
    %vm384 = vcmp.eq.s32.totalorder %v43, %v346
    %vm385 = vcmp.eq.s32.totalorder %v43, %v349
    %vm386 = vcmp.eq.s32.totalorder %v43, %v352
    %vm387 = vcmp.eq.s32.totalorder %v43, %v355
    %vm388 = vcmp.eq.s32.totalorder %v43, %v358
    %vm389 = vcmp.eq.s32.totalorder %v43, %v361
    %vm390 = vcmp.eq.s32.totalorder %v43, %v364
    %vm391 = vcmp.eq.s32.totalorder %v43, %v367
    %vm392 = vcmp.eq.s32.totalorder %v43, %v370
    %vm393 = vcmp.eq.s32.totalorder %v43, %v373
    %vm394 = vcmp.eq.s32.totalorder %v43, %v376
    %vm395 = vcmp.eq.s32.totalorder %v43, %v379
    %v396 = vsel %vm380, 1, 0
    %v397 = vsel %vm381, 1, 0
    %v398 = vsel %vm382, 1, 0
    %v399 = vsel %vm383, 1, 0
    %v400 = vsel %vm384, 1, 0
    %v401 = vsel %vm385, 1, 0
    %v402 = vsel %vm386, 1, 0
    %v403 = vsel %vm387, 1, 0
    %v404 = vsel %vm388, 1, 0
    %v405 = vsel %vm389, 1, 0
    %v406 = vsel %vm390, 1, 0
    %v407 = vsel %vm391, 1, 0
    %v408 = vsel %vm392, 1, 0
    %v409 = vsel %vm393, 1, 0
    %v410 = vsel %vm394, 1, 0
    %v411 = vsel %vm395, 1, 0
    %v412 = vcvt.s32.f32 %v396
    %v413 = vcvt.s32.f32 %v397
    %v414 = vcvt.s32.f32 %v398
    %v415 = vcvt.s32.f32 %v399
    %v416 = vcvt.s32.f32 %v400
    %v417 = vcvt.s32.f32 %v401
    %v418 = vcvt.s32.f32 %v402
    %v419 = vcvt.s32.f32 %v403
    %v420 = vcvt.s32.f32 %v404
    %v421 = vcvt.s32.f32 %v405
    %v422 = vcvt.s32.f32 %v406
    %v423 = vcvt.s32.f32 %v407
    %v424 = vcvt.s32.f32 %v408
    %v425 = vcvt.s32.f32 %v409
    %v426 = vcvt.s32.f32 %v410
    %v427 = vcvt.s32.f32 %v411
    %v428 = vld [vmem:[#allocation2] sm:$0xff]
    %v429 = vld [vmem:[#allocation2 + $0x8] sm:$0xff]
    %v430 = vld [vmem:[#allocation2 + $0x10] sm:$0xff]
    %v431 = vld [vmem:[#allocation2 + $0x18] sm:$0xff]
    %v432 = vld [vmem:[#allocation2 + $0x20] sm:$0xff]
    %v433 = vld [vmem:[#allocation2 + $0x28] sm:$0xff]
    %v434 = vld [vmem:[#allocation2 + $0x30] sm:$0xff]
    %v435 = vld [vmem:[#allocation2 + $0x38] sm:$0xff]
    %v436 = vld [vmem:[#allocation2 + $0x40] sm:$0xff]
    %v437 = vld [vmem:[#allocation2 + $0x48] sm:$0xff]
    %v438 = vld [vmem:[#allocation2 + $0x50] sm:$0xff]
    %v439 = vld [vmem:[#allocation2 + $0x58] sm:$0xff]
    %v440 = vld [vmem:[#allocation2 + $0x60] sm:$0xff]
    %v441 = vld [vmem:[#allocation2 + $0x68] sm:$0xff]
    %v442 = vld [vmem:[#allocation2 + $0x70] sm:$0xff]
    %v443 = vld [vmem:[#allocation2 + $0x78] sm:$0xff]
    %v444 = vld [vmem:[#allocation2 + $0x80] sm:$0xff]
    %v445 = vld [vmem:[#allocation2 + $0x88] sm:$0xff]
    %v446 = vld [vmem:[#allocation2 + $0x90] sm:$0xff]
    %v447 = vld [vmem:[#allocation2 + $0x98] sm:$0xff]
    %v448 = vld [vmem:[#allocation2 + $0xa0] sm:$0xff]
    %v449 = vld [vmem:[#allocation2 + $0xa8] sm:$0xff]
    %v450 = vld [vmem:[#allocation2 + $0xb0] sm:$0xff]
    %v451 = vld [vmem:[#allocation2 + $0xb8] sm:$0xff]
    %v452 = vld [vmem:[#allocation2 + $0xc0] sm:$0xff]
    %v453 = vld [vmem:[#allocation2 + $0xc8] sm:$0xff]
    %v454 = vld [vmem:[#allocation2 + $0xd0] sm:$0xff]
    %v455 = vld [vmem:[#allocation2 + $0xd8] sm:$0xff]
    %v456 = vld [vmem:[#allocation2 + $0xe0] sm:$0xff]
    %v457 = vld [vmem:[#allocation2 + $0xe8] sm:$0xff]
    %v458 = vld [vmem:[#allocation2 + $0xf0] sm:$0xff]
    %v459 = vld [vmem:[#allocation2 + $0xf8] sm:$0xff]
    %v460 = vld [vmem:[#allocation2 + $0x100] sm:$0xff]
    %v461 = vld [vmem:[#allocation2 + $0x108] sm:$0xff]
    %v462 = vld [vmem:[#allocation2 + $0x110] sm:$0xff]
    %v463 = vld [vmem:[#allocation2 + $0x118] sm:$0xff]
    %v464 = vld [vmem:[#allocation2 + $0x120] sm:$0xff]
    %v465 = vld [vmem:[#allocation2 + $0x128] sm:$0xff]
    %v466 = vld [vmem:[#allocation2 + $0x130] sm:$0xff]
    %v467 = vld [vmem:[#allocation2 + $0x138] sm:$0xff]
    %v468 = vld [vmem:[#allocation2 + $0x140] sm:$0xff]
    %v469 = vld [vmem:[#allocation2 + $0x148] sm:$0xff]
    %v470 = vld [vmem:[#allocation2 + $0x150] sm:$0xff]
    %v471 = vld [vmem:[#allocation2 + $0x158] sm:$0xff]
    %v472 = vld [vmem:[#allocation2 + $0x160] sm:$0xff]
    %v473 = vld [vmem:[#allocation2 + $0x168] sm:$0xff]
    %v474 = vld [vmem:[#allocation2 + $0x170] sm:$0xff]
    %v475 = vld [vmem:[#allocation2 + $0x178] sm:$0xff]
    %v476 = vld [vmem:[#allocation2 + $0x180] sm:$0xff]
    %v477 = vld [vmem:[#allocation2 + $0x188] sm:$0xff]
    %v478 = vld [vmem:[#allocation2 + $0x190] sm:$0xff]
    %v479 = vld [vmem:[#allocation2 + $0x198] sm:$0xff]
    %v480 = vld [vmem:[#allocation2 + $0x1a0] sm:$0xff]
    %v481 = vld [vmem:[#allocation2 + $0x1a8] sm:$0xff]
    %v482 = vld [vmem:[#allocation2 + $0x1b0] sm:$0xff]
    %v483 = vld [vmem:[#allocation2 + $0x1b8] sm:$0xff]
    %v484 = vld [vmem:[#allocation2 + $0x1c0] sm:$0xff]
    %v485 = vld [vmem:[#allocation2 + $0x1c8] sm:$0xff]
    %v486 = vld [vmem:[#allocation2 + $0x1d0] sm:$0xff]
    %v487 = vld [vmem:[#allocation2 + $0x1d8] sm:$0xff]
    %v488 = vld [vmem:[#allocation2 + $0x1e0] sm:$0xff]
    %v489 = vld [vmem:[#allocation2 + $0x1e8] sm:$0xff]
    %v490 = vld [vmem:[#allocation2 + $0x1f0] sm:$0xff]
    %v491 = vld [vmem:[#allocation2 + $0x1f8] sm:$0xff]
    %492 = vmatprep.subr.mxu0 0.0
    %493 = vmatpush1.msra.mxu0 %v443
    %494 = vmatprep.subr.mxu0 0.0
    %495 = vmatpush1.msra.mxu0 %v442
    %496 = vmatprep.subr.mxu0 0.0
    %497 = vmatpush1.msra.mxu0 %v441
    %498 = vmatprep.subr.mxu0 0.0
    %499 = vmatpush1.msra.mxu0 %v440
    %500 = vmatprep.subr.mxu0 0.0
    %501 = vmatpush1.msra.mxu0 %v439
    %502 = vmatprep.subr.mxu0 0.0
    %503 = vmatpush1.msra.mxu0 %v438
    %504 = vmatprep.subr.mxu0 0.0
    %505 = vmatpush1.msra.mxu0 %v437
    %506 = vmatprep.subr.mxu0 0.0
    %507 = vmatpush1.msra.mxu0 %v436
    %508 = vmatprep.subr.mxu0 0.0
    %509 = vmatpush1.msra.mxu0 %v435
    %510 = vmatprep.subr.mxu0 0.0
    %511 = vmatpush1.msra.mxu0 %v434
    %512 = vmatprep.subr.mxu0 0.0
    %513 = vmatpush1.msra.mxu0 %v433
    %514 = vmatprep.subr.mxu0 0.0
    %515 = vmatpush1.msra.mxu0 %v432
    %516 = vmatprep.subr.mxu0 0.0
    %517 = vmatpush1.msra.mxu0 %v431
    %518 = vmatprep.subr.mxu0 0.0
    %519 = vmatpush1.msra.mxu0 %v430
    %520 = vmatprep.subr.mxu0 0.0
    %521 = vmatpush1.msra.mxu0 %v429
    %522 = vmatprep.subr.mxu0 0.0
    %523 = vmatpush1.msra.mxu0 %v428
    %524 = vmatprep.subr.mxu0 0.0
    %525 = vmatpush2.msra.mxu0 %v459
    %526 = vmatprep.subr.mxu0 0.0
    %527 = vmatpush2.msra.mxu0 %v458
    %528 = vmatprep.subr.mxu0 0.0
    %529 = vmatpush2.msra.mxu0 %v457
    %530 = vmatprep.subr.mxu0 0.0
    %531 = vmatpush2.msra.mxu0 %v456
    %532 = vmatprep.subr.mxu0 0.0
    %533 = vmatpush2.msra.mxu0 %v455
    %534 = vmatprep.subr.mxu0 0.0
    %535 = vmatpush2.msra.mxu0 %v454
    %536 = vmatprep.subr.mxu0 0.0
    %537 = vmatpush2.msra.mxu0 %v453
    %538 = vmatprep.subr.mxu0 0.0
    %539 = vmatpush2.msra.mxu0 %v452
    %540 = vmatprep.subr.mxu0 0.0
    %541 = vmatpush2.msra.mxu0 %v451
    %542 = vmatprep.subr.mxu0 0.0
    %543 = vmatpush2.msra.mxu0 %v450
    %544 = vmatprep.subr.mxu0 0.0
    %545 = vmatpush2.msra.mxu0 %v449
    %546 = vmatprep.subr.mxu0 0.0
    %547 = vmatpush2.msra.mxu0 %v448
    %548 = vmatprep.subr.mxu0 0.0
    %549 = vmatpush2.msra.mxu0 %v447
    %550 = vmatprep.subr.mxu0 0.0
    %551 = vmatpush2.msra.mxu0 %v446
    %552 = vmatprep.subr.mxu0 0.0
    %553 = vmatpush2.msra.mxu0 %v445
    %554 = vmatprep.subr.mxu0 0.0
    %555 = vmatpush2.msra.mxu0 %v444
    %556 = vmatprep.mubr.f32.mxu0 %v220
    %557 = vmatmul.mubr.f32.gmra.mxu0 %v124
    %v558 = vpop.f32.mrf.mxu0
    %v559 = vadd.f32 0.0, %v558
    %v560 = vpop.f32.mrf.mxu0
    %561 = vmatprep.mubr.f32.mxu0 %v221
    %562 = vmatmul.mubr.f32.gmra.mxu0 %v125
    %v563 = vpop.f32.mrf.mxu0
    %v564 = vadd.f32 0.0, %v563
    %v565 = vpop.f32.mrf.mxu0
    %566 = vmatprep.mubr.f32.mxu0 %v222
    %567 = vmatmul.mubr.f32.gmra.mxu0 %v126
    %v568 = vpop.f32.mrf.mxu0
    %v569 = vadd.f32 0.0, %v568
    %v570 = vpop.f32.mrf.mxu0
    %571 = vmatprep.mubr.f32.mxu0 %v223
    %572 = vmatmul.mubr.f32.gmra.mxu0 %v127
    %v573 = vpop.f32.mrf.mxu0
    %v574 = vadd.f32 0.0, %v573
    %v575 = vpop.f32.mrf.mxu0
    %576 = vmatprep.mubr.f32.mxu0 %v224
    %577 = vmatmul.mubr.f32.gmra.mxu0 %v128
    %v578 = vpop.f32.mrf.mxu0
    %v579 = vadd.f32 0.0, %v578
    %v580 = vpop.f32.mrf.mxu0
    %581 = vmatprep.mubr.f32.mxu0 %v225
    %582 = vmatmul.mubr.f32.gmra.mxu0 %v129
    %v583 = vpop.f32.mrf.mxu0
    %v584 = vadd.f32 0.0, %v583
    %v585 = vpop.f32.mrf.mxu0
    %586 = vmatprep.mubr.f32.mxu0 %v226
    %587 = vmatmul.mubr.f32.gmra.mxu0 %v130
    %v588 = vpop.f32.mrf.mxu0
    %v589 = vadd.f32 0.0, %v588
    %v590 = vpop.f32.mrf.mxu0
    %591 = vmatprep.mubr.f32.mxu0 %v227
    %592 = vmatmul.mubr.f32.gmra.mxu0 %v131
    %v593 = vpop.f32.mrf.mxu0
    %v594 = vadd.f32 0.0, %v593
    %v595 = vpop.f32.mrf.mxu0
    %596 = vmatprep.mubr.f32.mxu0 %v228
    %597 = vmatmul.mubr.f32.gmra.mxu0 %v132
    %v598 = vpop.f32.mrf.mxu0
    %v599 = vadd.f32 0.0, %v598
    %v600 = vpop.f32.mrf.mxu0
    %601 = vmatprep.mubr.f32.mxu0 %v229
    %602 = vmatmul.mubr.f32.gmra.mxu0 %v133
    %v603 = vpop.f32.mrf.mxu0
    %v604 = vadd.f32 0.0, %v603
    %v605 = vpop.f32.mrf.mxu0
    %606 = vmatprep.mubr.f32.mxu0 %v230
    %607 = vmatmul.mubr.f32.gmra.mxu0 %v134
    %v608 = vpop.f32.mrf.mxu0
    %v609 = vadd.f32 0.0, %v608
    %v610 = vpop.f32.mrf.mxu0
    %611 = vmatprep.mubr.f32.mxu0 %v231
    %612 = vmatmul.mubr.f32.gmra.mxu0 %v135
    %v613 = vpop.f32.mrf.mxu0
    %v614 = vadd.f32 0.0, %v613
    %v615 = vpop.f32.mrf.mxu0
    %616 = vmatprep.mubr.f32.mxu0 %v232
    %617 = vmatmul.mubr.f32.gmra.mxu0 %v136
    %v618 = vpop.f32.mrf.mxu0
    %v619 = vadd.f32 0.0, %v618
    %v620 = vpop.f32.mrf.mxu0
    %621 = vmatprep.mubr.f32.mxu0 %v233
    %622 = vmatmul.mubr.f32.gmra.mxu0 %v137
    %v623 = vpop.f32.mrf.mxu0
    %v624 = vadd.f32 0.0, %v623
    %v625 = vpop.f32.mrf.mxu0
    %626 = vmatprep.mubr.f32.mxu0 %v234
    %627 = vmatmul.mubr.f32.gmra.mxu0 %v138
    %v628 = vpop.f32.mrf.mxu0
    %v629 = vadd.f32 0.0, %v628
    %v630 = vpop.f32.mrf.mxu0
    %631 = vmatprep.mubr.f32.mxu0 %v235
    %632 = vmatmul.mubr.f32.gmra.mxu0 %v139
    %v633 = vpop.f32.mrf.mxu0
    %v634 = vadd.f32 0.0, %v633
    %v635 = vpop.f32.mrf.mxu0
    %636 = vdwg.mxu0
    %637 = vmatprep.subr.mxu0 0.0
    %638 = vmatpush1.msra.mxu0 %v475
    %639 = vmatprep.subr.mxu0 0.0
    %640 = vmatpush1.msra.mxu0 %v474
    %641 = vmatprep.subr.mxu0 0.0
    %642 = vmatpush1.msra.mxu0 %v473
    %643 = vmatprep.subr.mxu0 0.0
    %644 = vmatpush1.msra.mxu0 %v472
    %645 = vmatprep.subr.mxu0 0.0
    %646 = vmatpush1.msra.mxu0 %v471
    %647 = vmatprep.subr.mxu0 0.0
    %648 = vmatpush1.msra.mxu0 %v470
    %649 = vmatprep.subr.mxu0 0.0
    %650 = vmatpush1.msra.mxu0 %v469
    %651 = vmatprep.subr.mxu0 0.0
    %652 = vmatpush1.msra.mxu0 %v468
    %653 = vmatprep.subr.mxu0 0.0
    %654 = vmatpush1.msra.mxu0 %v467
    %655 = vmatprep.subr.mxu0 0.0
    %656 = vmatpush1.msra.mxu0 %v466
    %657 = vmatprep.subr.mxu0 0.0
    %658 = vmatpush1.msra.mxu0 %v465
    %659 = vmatprep.subr.mxu0 0.0
    %660 = vmatpush1.msra.mxu0 %v464
    %661 = vmatprep.subr.mxu0 0.0
    %662 = vmatpush1.msra.mxu0 %v463
    %663 = vmatprep.subr.mxu0 0.0
    %664 = vmatpush1.msra.mxu0 %v462
    %665 = vmatprep.subr.mxu0 0.0
    %666 = vmatpush1.msra.mxu0 %v461
    %667 = vmatprep.subr.mxu0 0.0
    %668 = vmatpush1.msra.mxu0 %v460
    %669 = vmatprep.subr.mxu0 0.0
    %670 = vmatpush2.msra.mxu0 %v491
    %671 = vmatprep.subr.mxu0 0.0
    %672 = vmatpush2.msra.mxu0 %v490
    %673 = vmatprep.subr.mxu0 0.0
    %674 = vmatpush2.msra.mxu0 %v489
    %675 = vmatprep.subr.mxu0 0.0
    %676 = vmatpush2.msra.mxu0 %v488
    %677 = vmatprep.subr.mxu0 0.0
    %678 = vmatpush2.msra.mxu0 %v487
    %679 = vmatprep.subr.mxu0 0.0
    %680 = vmatpush2.msra.mxu0 %v486
    %681 = vmatprep.subr.mxu0 0.0
    %682 = vmatpush2.msra.mxu0 %v485
    %683 = vmatprep.subr.mxu0 0.0
    %684 = vmatpush2.msra.mxu0 %v484
    %685 = vmatprep.subr.mxu0 0.0
    %686 = vmatpush2.msra.mxu0 %v483
    %687 = vmatprep.subr.mxu0 0.0
    %688 = vmatpush2.msra.mxu0 %v482
    %689 = vmatprep.subr.mxu0 0.0
    %690 = vmatpush2.msra.mxu0 %v481
    %691 = vmatprep.subr.mxu0 0.0
    %692 = vmatpush2.msra.mxu0 %v480
    %693 = vmatprep.subr.mxu0 0.0
    %694 = vmatpush2.msra.mxu0 %v479
    %695 = vmatprep.subr.mxu0 0.0
    %696 = vmatpush2.msra.mxu0 %v478
    %697 = vmatprep.subr.mxu0 0.0
    %698 = vmatpush2.msra.mxu0 %v477
    %699 = vmatprep.subr.mxu0 0.0
    %700 = vmatpush2.msra.mxu0 %v476
    %701 = vmatprep.mubr.f32.mxu0 %v412
    %702 = vmatmul.mubr.f32.gmra.mxu0 %v316
    %v703 = vpop.f32.mrf.mxu0
    %v704 = vadd.f32 %v559, %v703
    %v705 = vpop.f32.mrf.mxu0
    %706 = vmatprep.mubr.f32.mxu0 %v413
    %707 = vmatmul.mubr.f32.gmra.mxu0 %v317
    %v708 = vpop.f32.mrf.mxu0
    %v709 = vadd.f32 %v564, %v708
    %v710 = vpop.f32.mrf.mxu0
    %711 = vmatprep.mubr.f32.mxu0 %v414
    %712 = vmatmul.mubr.f32.gmra.mxu0 %v318
    %v713 = vpop.f32.mrf.mxu0
    %v714 = vadd.f32 %v569, %v713
    %v715 = vpop.f32.mrf.mxu0
    %716 = vmatprep.mubr.f32.mxu0 %v415
    %717 = vmatmul.mubr.f32.gmra.mxu0 %v319
    %v718 = vpop.f32.mrf.mxu0
    %v719 = vadd.f32 %v574, %v718
    %v720 = vpop.f32.mrf.mxu0
    %721 = vmatprep.mubr.f32.mxu0 %v416
    %722 = vmatmul.mubr.f32.gmra.mxu0 %v320
    %v723 = vpop.f32.mrf.mxu0
    %v724 = vadd.f32 %v579, %v723
    %v725 = vpop.f32.mrf.mxu0
    %726 = vmatprep.mubr.f32.mxu0 %v417
    %727 = vmatmul.mubr.f32.gmra.mxu0 %v321
    %v728 = vpop.f32.mrf.mxu0
    %v729 = vadd.f32 %v584, %v728
    %v730 = vpop.f32.mrf.mxu0
    %731 = vmatprep.mubr.f32.mxu0 %v418
    %732 = vmatmul.mubr.f32.gmra.mxu0 %v322
    %v733 = vpop.f32.mrf.mxu0
    %v734 = vadd.f32 %v589, %v733
    %v735 = vpop.f32.mrf.mxu0
    %736 = vmatprep.mubr.f32.mxu0 %v419
    %737 = vmatmul.mubr.f32.gmra.mxu0 %v323
    %v738 = vpop.f32.mrf.mxu0
    %v739 = vadd.f32 %v594, %v738
    %v740 = vpop.f32.mrf.mxu0
    %741 = vmatprep.mubr.f32.mxu0 %v420
    %742 = vmatmul.mubr.f32.gmra.mxu0 %v324
    %v743 = vpop.f32.mrf.mxu0
    %v744 = vadd.f32 %v599, %v743
    %v745 = vpop.f32.mrf.mxu0
    %746 = vmatprep.mubr.f32.mxu0 %v421
    %747 = vmatmul.mubr.f32.gmra.mxu0 %v325
    %v748 = vpop.f32.mrf.mxu0
    %v749 = vadd.f32 %v604, %v748
    %v750 = vpop.f32.mrf.mxu0
    %751 = vmatprep.mubr.f32.mxu0 %v422
    %752 = vmatmul.mubr.f32.gmra.mxu0 %v326
    %v753 = vpop.f32.mrf.mxu0
    %v754 = vadd.f32 %v609, %v753
    %v755 = vpop.f32.mrf.mxu0
    %756 = vmatprep.mubr.f32.mxu0 %v423
    %757 = vmatmul.mubr.f32.gmra.mxu0 %v327
    %v758 = vpop.f32.mrf.mxu0
    %v759 = vadd.f32 %v614, %v758
    %v760 = vpop.f32.mrf.mxu0
    %761 = vmatprep.mubr.f32.mxu0 %v424
    %762 = vmatmul.mubr.f32.gmra.mxu0 %v328
    %v763 = vpop.f32.mrf.mxu0
    %v764 = vadd.f32 %v619, %v763
    %v765 = vpop.f32.mrf.mxu0
    %766 = vmatprep.mubr.f32.mxu0 %v425
    %767 = vmatmul.mubr.f32.gmra.mxu0 %v329
    %v768 = vpop.f32.mrf.mxu0
    %v769 = vadd.f32 %v624, %v768
    %v770 = vpop.f32.mrf.mxu0
    %771 = vmatprep.mubr.f32.mxu0 %v426
    %772 = vmatmul.mubr.f32.gmra.mxu0 %v330
    %v773 = vpop.f32.mrf.mxu0
    %v774 = vadd.f32 %v629, %v773
    %v775 = vpop.f32.mrf.mxu0
    %776 = vmatprep.mubr.f32.mxu0 %v427
    %777 = vmatmul.mubr.f32.gmra.mxu0 %v331
    %v778 = vpop.f32.mrf.mxu0
    %v779 = vadd.f32 %v634, %v778
    %v780 = vpop.f32.mrf.mxu0
    %781 = vdwg.mxu0
    %782 = vst [vmem:[#allocation5] sm:$0xff] %v704
    %783 = vst [vmem:[#allocation5 + $0x8] sm:$0xff] %v709
    %784 = vst [vmem:[#allocation5 + $0x10] sm:$0xff] %v714
    %785 = vst [vmem:[#allocation5 + $0x18] sm:$0xff] %v719
    %786 = vst [vmem:[#allocation5 + $0x20] sm:$0xff] %v724
    %787 = vst [vmem:[#allocation5 + $0x28] sm:$0xff] %v729
    %788 = vst [vmem:[#allocation5 + $0x30] sm:$0xff] %v734
    %789 = vst [vmem:[#allocation5 + $0x38] sm:$0xff] %v739
    %790 = vst [vmem:[#allocation5 + $0x40] sm:$0xff] %v744
    %791 = vst [vmem:[#allocation5 + $0x48] sm:$0xff] %v749
    %792 = vst [vmem:[#allocation5 + $0x50] sm:$0xff] %v754
    %793 = vst [vmem:[#allocation5 + $0x58] sm:$0xff] %v759
    %794 = vst [vmem:[#allocation5 + $0x60] sm:$0xff] %v764
    %795 = vst [vmem:[#allocation5 + $0x68] sm:$0xff] %v769
    %796 = vst [vmem:[#allocation5 + $0x70] sm:$0xff] %v774
    %797 = vst [vmem:[#allocation5 + $0x78] sm:$0xff] %v779
    // Predicated region
    $region14: #{tpu_custom_call.1} parent=1 // pred_check
      _
    $region15: #{tpu_custom_call.1} parent=1 // pred_check_branch
      %799 = sbr.rel (0) target = $region17
    $region16: #{tpu_custom_call.1} parent=1 // pred_region
      %s801 = ssub.s32 2048, 2048
      %802 = vsyncadd [#allocation4], %s801
      %s803 = sshll.u32 [#allocation5], 4
      %s804 = int_to_ptr.vmem [resolvable:$true] %s803
      %809 = dma.vmem_to_hbm [thread:$0]  %s804, 2048, %s2, [#allocation4], 128, 128, 8
    $region17: #{tpu_custom_call.1} parent=1 // pred_fallthru
      _
    // Predicated region
    $region18: #{tpu_custom_call.1} parent=1 // pred_check
      _
    $region19: #{tpu_custom_call.1} parent=1 // pred_check_branch
      %811 = sbr.rel (0) target = $region21
    $region20: #{tpu_custom_call.1} parent=1 // pred_region
      %812 = dma.done [#allocation4], 2048
    $region21: #{tpu_custom_call.1} parent=1 // pred_fallthru
      _
    %813 = vsyncpa [#allocation3], 1
    %814 = vsyncpa [#allocation4], 1

</llo_original>
